<compile_context>
chip_gen: v5e
topology: v5e:2x2
jax: 0.10.0
libtpu: 0.0.40
codegen_flags: <defaults>
</compile_context>

<pallas_src>
import functools

import jax
import jax.numpy as jnp
from jax.experimental import pallas as pl
from jax.experimental.pallas import tpu as pltpu


# ----------------------------------------------------------------------------
# Kernel 1a: tiled spatial pooling -> partial [sum | max] per (batch, chunk).
# ----------------------------------------------------------------------------
def _pool_kernel(u_ref, part_ref, sum_sc, max_sc, *, ts, valid_s, mask_tail):
    r = pl.program_id(2)

    @pl.when(r == 0)
    def _():
        sum_sc[...] = jnp.zeros_like(sum_sc)
        max_sc[...] = jnp.full_like(max_sc, -jnp.inf)

    u = u_ref[0].astype(jnp.float32)                      # (C, ts), f32 compute
    if mask_tail:
        # Padding is zero -> already safe for the sum; mask it out of the max only.
        blk = pl.program_id(1) * pl.num_programs(2) + r
        idx = blk * ts + jax.lax.broadcasted_iota(jnp.int32, u.shape, 1)
        u_max = jnp.where(idx < valid_s, u, -jnp.inf)
    else:
        u_max = u

    sum_sc[...] += jnp.sum(u, axis=1, keepdims=True)      # (C, 1)
    max_sc[...] = jnp.maximum(max_sc[...], jnp.max(u_max, axis=1, keepdims=True))

    @pl.when(r == pl.num_programs(2) - 1)
    def _():
        part_ref[0, 0, :, 0:1] = sum_sc[...]
        part_ref[0, 0, :, 1:2] = max_sc[...]


# ----------------------------------------------------------------------------
# Kernel 1b: fold chunk partials + cSE MLP (single [avg | max] pass) -> gate.
# ----------------------------------------------------------------------------
def _cse_gate_kernel(part_ref, w1_ref, b1_ref, w2_ref, b2_ref, gate_ref, *, inv_s):
    n_par = part_ref.shape[1]                             # static (1 or 2)
    sums = part_ref[0, 0, :, 0:1]                         # (C, 1)
    maxs = part_ref[0, 0, :, 1:2]                         # (C, 1)
    for k in range(1, n_par):
        sums = sums + part_ref[0, k, :, 0:1]
        maxs = jnp.maximum(maxs, part_ref[0, k, :, 1:2])

    x = jnp.concatenate([sums * inv_s, maxs], axis=1)     # (C, 2): [avg | max]
    h = jnp.maximum(
        jnp.dot(w1_ref[...], x, preferred_element_type=jnp.float32) + b1_ref[...], 0.0)
    z = jnp.dot(w2_ref[...], h, preferred_element_type=jnp.float32) + b2_ref[...]
    gate_ref[0, :, :] = jax.nn.sigmoid(z[:, 0:1] + z[:, 1:2])   # (C, 1)


# ----------------------------------------------------------------------------
# Kernel 2: fused sSE (1x1 conv over channels + sigmoid) + combined gate apply.
#           out = U * (cse_gate + sigmoid(ws . U + bs))
# ----------------------------------------------------------------------------
def _apply_kernel(u_ref, gate_ref, ws_ref, bs_ref, o_ref):
    u = u_ref[0].astype(jnp.float32)                      # (C, ts)
    # Exact f32 channel reduction on the VPU/XLU (kernel is HBM-bound; the units have slack).
    # On v7x this reduce could also be offloaded to the idle MXU as (1,C)@(C,ts).
    sse_lin = jnp.sum(u * ws_ref[...], axis=0, keepdims=True) + bs_ref[0, 0]   # (1, ts)
    gate = gate_ref[0] + jax.nn.sigmoid(sse_lin)          # (C,1) + (1,ts) -> (C,ts)
    o_ref[0] = (u * gate).astype(o_ref.dtype)


# ----------------------------------------------------------------------------
# Host wrapper
# ----------------------------------------------------------------------------
def _round_up(x, m):
    return -(-x // m) * m


def _fit_tile(c, itemsize, s_cap, target_hbm_bytes, vmem_bytes_per_elem, vmem_budget):
    """Largest spatial tile (multiple of 128, <= s_cap) hitting the HBM-bytes target
    while keeping the estimated per-block VMEM footprint under the budget."""
    ts = (target_hbm_bytes // (c * itemsize)) // 128 * 128
    ts = max(128, min(int(ts), int(s_cap)))
    while ts > 128 and c * ts * vmem_bytes_per_elem > 0.8 * vmem_budget:
        ts -= 128
    return int(ts)


def scse_forward(u, params):
    """scSE forward. u: [B, C, D, H, W] (NCDHW), any float dtype. Returns same shape/dtype."""
    B, C, D, H, W = u.shape
    S = D * H * W
    dtype = u.dtype
    itemsize = jnp.dtype(dtype).itemsize
    Ch = params["w1"].shape[0]

    # ---- generation-aware VMEM budget (v7x: 64 MiB phys -> ~36 MiB; v5e/v6e: -> 64 MiB) ----
    try:
        vmem_cap = int(pltpu.get_tpu_info().vmem_capacity_bytes)
    except Exception:
        vmem_cap = 64 * 1024 * 1024
    vmem_budget = int(min(vmem_cap // 2 + (4 << 20), 64 << 20))

    # ---- byte-budget-driven spatial tiles (multiples of 128) ----
    s128 = _round_up(S, 128)
    # apply kernel: 2 in + 2 out buffers + f32 temps  -> smaller tile
    ts_apply = _fit_tile(C, itemsize, s128, 2 << 20, 4 * itemsize + 12, vmem_budget)
    # pool kernel: only the input is double-buffered  -> larger tile
    ts_pool = _fit_tile(C, itemsize, s128, 4 << 20, 2 * itemsize + 12, vmem_budget)
    ts_pool = max(ts_apply, (ts_pool // ts_apply) * ts_apply)   # multiple of ts_apply

    # ---- spatial chunking: split pooling across 2 chunks when B alone can't feed 2 cores ----
    n_par = 2 if (B == 1 and S >= 2 * ts_pool) else 1
    S_pad = _round_up(S, ts_pool * n_par)
    n_red = (S_pad // ts_pool) // n_par
    n_apply = S_pad // ts_apply
    mask_tail = S_pad != S

    need = max(C * ts_apply * (4 * itemsize + 12), C * ts_pool * (2 * itemsize + 12))
    vmem_limit = int(min(max(vmem_budget, need + (2 << 20)), int(0.9 * vmem_cap)))

    # ---- inputs (native dtype for U; tiny params in f32) ----
    u3 = u.reshape(B, C, S)
    if mask_tail:
        u3 = jnp.pad(u3, ((0, 0), (0, 0), (0, S_pad - S)))   # zero-pad: safe for the sum

    w1 = params["w1"].astype(jnp.float32)                    # (C//2, C)  (PyTorch (out, in))
    b1 = params["b1"].reshape(-1, 1).astype(jnp.float32)     # (C//2, 1)
    w2 = params["w2"].astype(jnp.float32)                    # (C, C//2)
    b2 = params["b2"].reshape(-1, 1).astype(jnp.float32)     # (C, 1)
    ws = params["ws"].reshape(C, 1).astype(jnp.float32)      # (C, 1)
    bs = params["bs"].reshape(1, 1).astype(jnp.float32)      # (1, 1)

    # ---- kernel 1a: partial sum/max pooling over spatial tiles ----
    partials = pl.pallas_call(
        functools.partial(_pool_kernel, ts=ts_pool, valid_s=S, mask_tail=mask_tail),
        out_shape=jax.ShapeDtypeStruct((B, n_par, C, 2), jnp.float32),
        grid=(B, n_par, n_red),
        in_specs=[pl.BlockSpec((1, C, ts_pool), lambda b, p, r: (b, 0, p * n_red + r))],
        out_specs=pl.BlockSpec((1, 1, C, 2), lambda b, p, r: (b, p, 0, 0)),
        scratch_shapes=[pltpu.VMEM((C, 1), jnp.float32),
                        pltpu.VMEM((C, 1), jnp.float32)],
        compiler_params=pltpu.CompilerParams(
            dimension_semantics=("parallel", "parallel", "arbitrary"),
            vmem_limit_bytes=vmem_limit),
    )(u3)

    # ---- kernel 1b: fold chunks + cSE MLP -> per-(b, c) sigmoid gate ----
    gate = pl.pallas_call(
        functools.partial(_cse_gate_kernel, inv_s=1.0 / float(S)),
        out_shape=jax.ShapeDtypeStruct((B, C, 1), jnp.float32),
        grid=(B,),
        in_specs=[
            pl.BlockSpec((1, n_par, C, 2), lambda b: (b, 0, 0, 0)),
            pl.BlockSpec((Ch, C), lambda b: (0, 0)),
            pl.BlockSpec((Ch, 1), lambda b: (0, 0)),
            pl.BlockSpec((C, Ch), lambda b: (0, 0)),
            pl.BlockSpec((C, 1), lambda b: (0, 0)),
        ],
        out_specs=pl.BlockSpec((1, C, 1), lambda b: (b, 0, 0)),
        compiler_params=pltpu.CompilerParams(
            dimension_semantics=("parallel",),
            vmem_limit_bytes=vmem_limit),
    )(partials, w1, b1, w2, b2)

    # ---- kernel 2: fused sSE + gate apply (native-dtype output) ----
    # Alias U into the output only when u3 is a fresh (padded) intermediate; otherwise the
    # non-donated caller buffer would force XLA to insert an extra copy pass.
    io_alias = {0: 0} if mask_tail else {}
    out3 = pl.pallas_call(
        _apply_kernel,
        out_shape=jax.ShapeDtypeStruct((B, C, S_pad), dtype),
        grid=(B, n_apply),
        in_specs=[
            pl.BlockSpec((1, C, ts_apply), lambda b, s: (b, 0, s)),
            pl.BlockSpec((1, C, 1), lambda b, s: (b, 0, 0)),
            pl.BlockSpec((C, 1), lambda b, s: (0, 0)),
            pl.BlockSpec((1, 1), lambda b, s: (0, 0)),
        ],
        out_specs=pl.BlockSpec((1, C, ts_apply), lambda b, s: (b, 0, s)),
        input_output_aliases=io_alias,
        compiler_params=pltpu.CompilerParams(
            dimension_semantics=("parallel", "parallel"),
            vmem_limit_bytes=vmem_limit),
    )(u3, gate, ws, bs)

    if mask_tail:
        out3 = out3[:, :, :S]
    return out3.reshape(B, C, D, H, W)


# ----------------------------------------------------------------------------
# Pure-JAX reference (semantics of the PyTorch scSE module)
# ----------------------------------------------------------------------------
def scse_ref(u, params):
    B, C = u.shape[0], u.shape[1]
    uf = u.reshape(B, C, -1).astype(jnp.float32)
    avg = jnp.mean(uf, axis=-1)                             # [B, C]
    mx = jnp.max(uf, axis=-1)                               # [B, C]

    def mlp(v):
        h = jnp.maximum(v @ params["w1"].T + params["b1"], 0.0)
        return h @ params["w2"].T + params["b2"]

    cse = jax.nn.sigmoid(mlp(avg) + mlp(mx))                # [B, C]
    sse = jax.nn.sigmoid(jnp.einsum("bcs,c->bs", uf, params["ws"]) + params["bs"][0])
    out = uf * cse[:, :, None] + uf * sse[:, None, :]
    return out.reshape(u.shape)


def init_params(key, c):
    ch = c // 2
    ks = jax.random.split(key, 6)
    sd = 0.2
    return {
        "w1": jax.random.normal(ks[0], (ch, c), jnp.float32) * sd,   # Conv_Squeeze (out, in)
        "b1": jax.random.normal(ks[1], (ch,), jnp.float32) * sd,
        "w2": jax.random.normal(ks[2], (c, ch), jnp.float32) * sd,   # Conv_Excitation
        "b2": jax.random.normal(ks[3], (c,), jnp.float32) * sd,
        "ws": jax.random.normal(ks[4], (c,), jnp.float32) * sd,      # sSE Conv1x1 weight
        "bs": jax.random.normal(ks[5], (1,), jnp.float32) * sd,
    }


if __name__ == "__main__":
    root = jax.random.PRNGKey(0)
    k1, k2, k3, k4 = jax.random.split(root, 4)
    fwd = jax.jit(scse_forward)

    # Case 1: f32, lane-dense spatial extent (S = 512)
    B, C, D, H, W = 2, 32, 8, 8, 8
    u = jax.random.normal(k1, (B, C, D, H, W), jnp.float32)
    params = init_params(k2, C)
    out = jax.block_until_ready(fwd(u, params))
    assert out.shape == (B, C, D, H, W) and out.dtype == u.dtype
    assert bool(jnp.all(jnp.isfinite(out)))
    err = float(jnp.max(jnp.abs(out - scse_ref(u, params))))
    assert err < 2e-3, f"f32 max abs error {err}"

    # Case 2: native bf16 I/O (f32 compute inside the kernels)
    u16 = u.astype(jnp.bfloat16)
    out16 = jax.block_until_ready(fwd(u16, params))
    assert out16.dtype == jnp.bfloat16
    ref16 = scse_ref(u16.astype(jnp.float32), params)
    err16 = float(jnp.max(jnp.abs(out16.astype(jnp.float32) - ref16)))
    assert err16 < 1e-1, f"bf16 max abs error {err16}"

    # Case 3: ragged spatial extent (S = 5*6*7 = 210 -> padded & masked), B = 1
    B2, C2 = 1, 32
    u2 = jax.random.normal(k3, (B2, C2, 5, 6, 7), jnp.float32)
    params2 = init_params(k4, C2)
    out2 = jax.block_until_ready(fwd(u2, params2))
    assert out2.shape == u2.shape and out2.dtype == u2.dtype
    err2 = float(jnp.max(jnp.abs(out2 - scse_ref(u2, params2))))
    assert err2 < 2e-3, f"ragged-S max abs error {err2}"

    print("KERNEL_OK")
</pallas_src>

<mosaic_0001>
module attributes {stable_mosaic.version = 11 : i64} {
  func.func @_pool_kernel(%arg0: i32, %arg1: i32, %arg2: i32, %arg3: memref<1x32x512xf32, #tpu.memory_space<vmem>>, %arg4: memref<1x1x32x2xf32, #tpu.memory_space<vmem>>, %arg5: memref<32x1xf32, #tpu.memory_space<vmem>>, %arg6: memref<32x1xf32, #tpu.memory_space<vmem>>) attributes {dimension_semantics = [#tpu.dimension_semantics<parallel>, #tpu.dimension_semantics<parallel>, #tpu.dimension_semantics<arbitrary>], iteration_bounds = array<i64: 2, 1, 1>, scalar_prefetch = 0 : i64, scratch_operands = 2 : i64, tpu.core_type = #tpu.core_type<tc>, window_params = [{transform_indices = @transform_0, window_bounds = array<i64: 1, 32, 512>}, {transform_indices = @transform_1, window_bounds = array<i64: 1, 1, 32, 2>}]} {
    %c0_i32 = arith.constant 0 : i32
    %0 = arith.cmpi eq, %arg2, %c0_i32 : i32
    %1 = arith.extui %0 : i1 to i32
    %c0_i32_0 = arith.constant 0 : i32
    %2 = arith.cmpi ne, %1, %c0_i32_0 : i32
    scf.if %2 {
      %cst_14 = arith.constant 0.000000e+00 : f32
      %18 = vector.broadcast %cst_14 : f32 to vector<32x1xf32>
      %c0_15 = arith.constant 0 : index
      %c0_16 = arith.constant 0 : index
      %19 = vector.load %arg5[%c0_15, %c0_16] : memref<32x1xf32, #tpu.memory_space<vmem>>, vector<32x1xf32>
      tpu.vector_store %arg5[%c0_15, %c0_16], %18 {strides = array<i32>} : memref<32x1xf32, #tpu.memory_space<vmem>>, vector<32x1xf32>,
      %cst_17 = arith.constant 0xFF800000 : f32
      %20 = vector.broadcast %cst_17 : f32 to vector<32x1xf32>
      %c0_18 = arith.constant 0 : index
      %c0_19 = arith.constant 0 : index
      %21 = vector.load %arg6[%c0_18, %c0_19] : memref<32x1xf32, #tpu.memory_space<vmem>>, vector<32x1xf32>
      tpu.vector_store %arg6[%c0_18, %c0_19], %20 {strides = array<i32>} : memref<32x1xf32, #tpu.memory_space<vmem>>, vector<32x1xf32>,
    } else {
    }
    %c0 = arith.constant 0 : index
    %c0_1 = arith.constant 0 : index
    %c0_2 = arith.constant 0 : index
    %3 = vector.load %arg3[%c0, %c0_1, %c0_2] : memref<1x32x512xf32, #tpu.memory_space<vmem>>, vector<1x32x512xf32>
    %4 = vector.shape_cast %3 : vector<1x32x512xf32> to vector<32x512xf32>
    %c0_3 = arith.constant 0 : index
    %c0_4 = arith.constant 0 : index
    %5 = vector.load %arg5[%c0_3, %c0_4] : memref<32x1xf32, #tpu.memory_space<vmem>>, vector<32x1xf32>
    %cst = arith.constant dense<0.000000e+00> : vector<32xf32>
    %6 = vector.multi_reduction <add>, %4, %cst [1] : vector<32x512xf32> to vector<32xf32>
    %7 = vector.shape_cast %6 : vector<32xf32> to vector<32x1xf32>
    %8 = arith.addf %5, %7 : vector<32x1xf32>
    %c0_5 = arith.constant 0 : index
    %c0_6 = arith.constant 0 : index
    %9 = vector.load %arg5[%c0_5, %c0_6] : memref<32x1xf32, #tpu.memory_space<vmem>>, vector<32x1xf32>
    tpu.vector_store %arg5[%c0_5, %c0_6], %8 {strides = array<i32>} : memref<32x1xf32, #tpu.memory_space<vmem>>, vector<32x1xf32>,
    %c0_7 = arith.constant 0 : index
    %c0_8 = arith.constant 0 : index
    %10 = vector.load %arg6[%c0_7, %c0_8] : memref<32x1xf32, #tpu.memory_space<vmem>>, vector<32x1xf32>
    %cst_9 = arith.constant dense<0xFF800000> : vector<32xf32>
    %11 = vector.multi_reduction <maximumf>, %4, %cst_9 [1] : vector<32x512xf32> to vector<32xf32>
    %12 = vector.shape_cast %11 : vector<32xf32> to vector<32x1xf32>
    %13 = arith.maximumf %10, %12 : vector<32x1xf32>
    %c0_10 = arith.constant 0 : index
    %c0_11 = arith.constant 0 : index
    %14 = vector.load %arg6[%c0_10, %c0_11] : memref<32x1xf32, #tpu.memory_space<vmem>>, vector<32x1xf32>
    tpu.vector_store %arg6[%c0_10, %c0_11], %13 {strides = array<i32>} : memref<32x1xf32, #tpu.memory_space<vmem>>, vector<32x1xf32>,
    %c0_i32_12 = arith.constant 0 : i32
    %15 = arith.cmpi eq, %arg2, %c0_i32_12 : i32
    %16 = arith.extui %15 : i1 to i32
    %c0_i32_13 = arith.constant 0 : i32
    %17 = arith.cmpi ne, %16, %c0_i32_13 : i32
    scf.if %17 {
      %c0_14 = arith.constant 0 : index
      %c0_15 = arith.constant 0 : index
      %18 = vector.load %arg5[%c0_14, %c0_15] : memref<32x1xf32, #tpu.memory_space<vmem>>, vector<32x1xf32>
      %c0_16 = arith.constant 0 : index
      %c0_17 = arith.constant 0 : index
      %c0_18 = arith.constant 0 : index
      %c0_19 = arith.constant 0 : index
      %19 = vector.load %arg4[%c0_16, %c0_17, %c0_18, %c0_19] : memref<1x1x32x2xf32, #tpu.memory_space<vmem>>, vector<1x1x32x1xf32>
      %20 = vector.shape_cast %19 : vector<1x1x32x1xf32> to vector<32x1xf32>
      %21 = vector.shape_cast %18 : vector<32x1xf32> to vector<1x1x32x1xf32>
      tpu.vector_store %arg4[%c0_16, %c0_17, %c0_18, %c0_19], %21 {strides = array<i32>} : memref<1x1x32x2xf32, #tpu.memory_space<vmem>>, vector<1x1x32x1xf32>,
      %c0_20 = arith.constant 0 : index
      %c0_21 = arith.constant 0 : index
      %22 = vector.load %arg6[%c0_20, %c0_21] : memref<32x1xf32, #tpu.memory_space<vmem>>, vector<32x1xf32>
      %c0_22 = arith.constant 0 : index
      %c0_23 = arith.constant 0 : index
      %c0_24 = arith.constant 0 : index
      %c1 = arith.constant 1 : index
      %23 = vector.load %arg4[%c0_22, %c0_23, %c0_24, %c1] : memref<1x1x32x2xf32, #tpu.memory_space<vmem>>, vector<1x1x32x1xf32>
      %24 = vector.shape_cast %23 : vector<1x1x32x1xf32> to vector<32x1xf32>
      %25 = vector.shape_cast %22 : vector<32x1xf32> to vector<1x1x32x1xf32>
      tpu.vector_store %arg4[%c0_22, %c0_23, %c0_24, %c1], %25 {strides = array<i32>} : memref<1x1x32x2xf32, #tpu.memory_space<vmem>>, vector<1x1x32x1xf32>,
    } else {
    }
    return
  }
  func.func @transform_0(%arg0: i32, %arg1: i32, %arg2: i32) -> (i32, i32, i32) {
    %c1_i32 = arith.constant 1 : i32
    %0 = arith.muli %arg1, %c1_i32 : i32
    %1 = arith.addi %0, %arg2 : i32
    %c0_i32 = arith.constant 0 : i32
    %c0_i32_0 = arith.constant 0 : i32
    return %arg0, %c0_i32, %1 : i32, i32, i32
  }
  func.func @transform_1(%arg0: i32, %arg1: i32, %arg2: i32) -> (i32, i32, i32, i32) {
    %c0_i32 = arith.constant 0 : i32
    %c0_i32_0 = arith.constant 0 : i32
    %c0_i32_1 = arith.constant 0 : i32
    return %arg0, %arg1, %c0_i32, %c0_i32_0 : i32, i32, i32, i32
  }
}

module attributes {stable_mosaic.version = 11 : i64} {
  func.func @_cse_gate_kernel(%arg0: i32, %arg1: memref<1x1x32x2xf32, #tpu.memory_space<vmem>>, %arg2: memref<16x32xf32, #tpu.memory_space<vmem>>, %arg3: memref<16x1xf32, #tpu.memory_space<vmem>>, %arg4: memref<32x16xf32, #tpu.memory_space<vmem>>, %arg5: memref<32x1xf32, #tpu.memory_space<vmem>>, %arg6: memref<1x32x1xf32, #tpu.memory_space<vmem>>) attributes {dimension_semantics = [#tpu.dimension_semantics<parallel>], iteration_bounds = array<i64: 2>, scalar_prefetch = 0 : i64, scratch_operands = 0 : i64, tpu.core_type = #tpu.core_type<tc>, window_params = [{transform_indices = @transform_0, window_bounds = array<i64: 1, 1, 32, 2>}, {pipeline_mode = #tpu.pipeline_mode<synchronous>, transform_indices = @transform_1, window_bounds = array<i64: 16, 32>}, {pipeline_mode = #tpu.pipeline_mode<synchronous>, transform_indices = @transform_2, window_bounds = array<i64: 16, 1>}, {pipeline_mode = #tpu.pipeline_mode<synchronous>, transform_indices = @transform_3, window_bounds = array<i64: 32, 16>}, {pipeline_mode = #tpu.pipeline_mode<synchronous>, transform_indices = @transform_4, window_bounds = array<i64: 32, 1>}, {transform_indices = @transform_5, window_bounds = array<i64: 1, 32, 1>}]} {
    %c0 = arith.constant 0 : index
    %c0_0 = arith.constant 0 : index
    %c0_1 = arith.constant 0 : index
    %c0_2 = arith.constant 0 : index
    %0 = vector.load %arg1[%c0, %c0_0, %c0_1, %c0_2] : memref<1x1x32x2xf32, #tpu.memory_space<vmem>>, vector<1x1x32x1xf32>
    %1 = vector.shape_cast %0 : vector<1x1x32x1xf32> to vector<32x1xf32>
    %c0_3 = arith.constant 0 : index
    %c0_4 = arith.constant 0 : index
    %c0_5 = arith.constant 0 : index
    %c1 = arith.constant 1 : index
    %2 = vector.load %arg1[%c0_3, %c0_4, %c0_5, %c1] : memref<1x1x32x2xf32, #tpu.memory_space<vmem>>, vector<1x1x32x1xf32>
    %3 = vector.shape_cast %2 : vector<1x1x32x1xf32> to vector<32x1xf32>
    %cst = arith.constant 0.001953125 : f32
    %4 = vector.broadcast %cst : f32 to vector<32x1xf32>
    %5 = arith.mulf %1, %4 : vector<32x1xf32>
    %6 = tpu.concatenate %5, %3 in 1 : vector<32x1xf32>, vector<32x1xf32> -> vector<32x2xf32>
    %c0_6 = arith.constant 0 : index
    %c0_7 = arith.constant 0 : index
    %7 = vector.load %arg2[%c0_6, %c0_7] : memref<16x32xf32, #tpu.memory_space<vmem>>, vector<16x32xf32>
    %cst_8 = arith.constant dense<0.000000e+00> : vector<16x2xf32>
    %8 = tpu.matmul %7, %6, %cst_8 {dimension_numbers = #tpu.dot_dimension_numbers<[1], [0], [0], [1], [0, 0, 1, 1], [], []>} : vector<16x32xf32>, vector<32x2xf32>, vector<16x2xf32> -> vector<16x2xf32>
    %c0_9 = arith.constant 0 : index
    %c0_10 = arith.constant 0 : index
    %9 = vector.load %arg3[%c0_9, %c0_10] : memref<16x1xf32, #tpu.memory_space<vmem>>, vector<16x1xf32>
    %10 = vector.broadcast %9 : vector<16x1xf32> to vector<16x2xf32>
    %11 = arith.addf %8, %10 : vector<16x2xf32>
    %cst_11 = arith.constant 0.000000e+00 : f32
    %12 = vector.broadcast %cst_11 : f32 to vector<16x2xf32>
    %13 = arith.maximumf %11, %12 : vector<16x2xf32>
    %c0_12 = arith.constant 0 : index
    %c0_13 = arith.constant 0 : index
    %14 = vector.load %arg4[%c0_12, %c0_13] : memref<32x16xf32, #tpu.memory_space<vmem>>, vector<32x16xf32>
    %cst_14 = arith.constant dense<0.000000e+00> : vector<32x2xf32>
    %15 = tpu.matmul %14, %13, %cst_14 {dimension_numbers = #tpu.dot_dimension_numbers<[1], [0], [0], [1], [0, 0, 1, 1], [], []>} : vector<32x16xf32>, vector<16x2xf32>, vector<32x2xf32> -> vector<32x2xf32>
    %c0_15 = arith.constant 0 : index
    %c0_16 = arith.constant 0 : index
    %16 = vector.load %arg5[%c0_15, %c0_16] : memref<32x1xf32, #tpu.memory_space<vmem>>, vector<32x1xf32>
    %17 = vector.broadcast %16 : vector<32x1xf32> to vector<32x2xf32>
    %18 = arith.addf %15, %17 : vector<32x2xf32>
    %19 = vector.extract_strided_slice %18 {offsets = [0, 0], sizes = [32, 1], strides = [1, 1]} : vector<32x2xf32> to vector<32x1xf32>
    %20 = vector.extract_strided_slice %18 {offsets = [0, 1], sizes = [32, 1], strides = [1, 1]} : vector<32x2xf32> to vector<32x1xf32>
    %21 = arith.addf %19, %20 : vector<32x1xf32>
    %22 = arith.negf %21 : vector<32x1xf32>
    %23 = math.exp %22 : vector<32x1xf32>
    %cst_17 = arith.constant 1.000000e+00 : f32
    %24 = vector.broadcast %cst_17 : f32 to vector<32x1xf32>
    %25 = arith.addf %24, %23 : vector<32x1xf32>
    %26 = arith.divf %24, %25 : vector<32x1xf32>
    %c0_18 = arith.constant 0 : index
    %c0_19 = arith.constant 0 : index
    %c0_20 = arith.constant 0 : index
    %27 = vector.load %arg6[%c0_18, %c0_19, %c0_20] : memref<1x32x1xf32, #tpu.memory_space<vmem>>, vector<1x32x1xf32>
    %28 = vector.shape_cast %27 : vector<1x32x1xf32> to vector<32x1xf32>
    %29 = vector.shape_cast %26 : vector<32x1xf32> to vector<1x32x1xf32>
    tpu.vector_store %arg6[%c0_18, %c0_19, %c0_20], %29 {strides = array<i32>} : memref<1x32x1xf32, #tpu.memory_space<vmem>>, vector<1x32x1xf32>,
    return
  }
  func.func @transform_0(%arg0: i32) -> (i32, i32, i32, i32) {
    %c0_i32 = arith.constant 0 : i32
    %c0_i32_0 = arith.constant 0 : i32
    %c0_i32_1 = arith.constant 0 : i32
    %c0_i32_2 = arith.constant 0 : i32
    return %arg0, %c0_i32, %c0_i32_0, %c0_i32_1 : i32, i32, i32, i32
  }
  func.func @transform_1(%arg0: i32) -> (i32, i32) {
    %c0_i32 = arith.constant 0 : i32
    %c0_i32_0 = arith.constant 0 : i32
    %c0_i32_1 = arith.constant 0 : i32
    return %c0_i32, %c0_i32_0 : i32, i32
  }
  func.func @transform_2(%arg0: i32) -> (i32, i32) {
    %c0_i32 = arith.constant 0 : i32
    %c0_i32_0 = arith.constant 0 : i32
    %c0_i32_1 = arith.constant 0 : i32
    return %c0_i32, %c0_i32_0 : i32, i32
  }
  func.func @transform_3(%arg0: i32) -> (i32, i32) {
    %c0_i32 = arith.constant 0 : i32
    %c0_i32_0 = arith.constant 0 : i32
    %c0_i32_1 = arith.constant 0 : i32
    return %c0_i32, %c0_i32_0 : i32, i32
  }
  func.func @transform_4(%arg0: i32) -> (i32, i32) {
    %c0_i32 = arith.constant 0 : i32
    %c0_i32_0 = arith.constant 0 : i32
    %c0_i32_1 = arith.constant 0 : i32
    return %c0_i32, %c0_i32_0 : i32, i32
  }
  func.func @transform_5(%arg0: i32) -> (i32, i32, i32) {
    %c0_i32 = arith.constant 0 : i32
    %c0_i32_0 = arith.constant 0 : i32
    %c0_i32_1 = arith.constant 0 : i32
    return %arg0, %c0_i32, %c0_i32_0 : i32, i32, i32
  }
}

module attributes {stable_mosaic.version = 11 : i64} {
  func.func @_apply_kernel(%arg0: i32, %arg1: i32, %arg2: memref<1x32x512xf32, #tpu.memory_space<vmem>>, %arg3: memref<1x32x1xf32, #tpu.memory_space<vmem>>, %arg4: memref<32x1xf32, #tpu.memory_space<vmem>>, %arg5: memref<1x1xf32, #tpu.memory_space<vmem>>, %arg6: memref<1x32x512xf32, #tpu.memory_space<vmem>>) attributes {dimension_semantics = [#tpu.dimension_semantics<parallel>, #tpu.dimension_semantics<parallel>], iteration_bounds = array<i64: 2, 1>, scalar_prefetch = 0 : i64, scratch_operands = 0 : i64, tpu.core_type = #tpu.core_type<tc>, window_params = [{transform_indices = @transform_0, window_bounds = array<i64: 1, 32, 512>}, {transform_indices = @transform_1, window_bounds = array<i64: 1, 32, 1>}, {pipeline_mode = #tpu.pipeline_mode<synchronous>, transform_indices = @transform_2, window_bounds = array<i64: 32, 1>}, {pipeline_mode = #tpu.pipeline_mode<synchronous>, transform_indices = @transform_3, window_bounds = array<i64: 1, 1>}, {transform_indices = @transform_4, window_bounds = array<i64: 1, 32, 512>}]} {
    %c0 = arith.constant 0 : index
    %c0_0 = arith.constant 0 : index
    %c0_1 = arith.constant 0 : index
    %0 = vector.load %arg2[%c0, %c0_0, %c0_1] : memref<1x32x512xf32, #tpu.memory_space<vmem>>, vector<1x32x512xf32>
    %1 = vector.shape_cast %0 : vector<1x32x512xf32> to vector<32x512xf32>
    %c0_2 = arith.constant 0 : index
    %c0_3 = arith.constant 0 : index
    %2 = vector.load %arg4[%c0_2, %c0_3] : memref<32x1xf32, #tpu.memory_space<vmem>>, vector<32x1xf32>
    %3 = vector.broadcast %2 : vector<32x1xf32> to vector<32x512xf32>
    %4 = arith.mulf %1, %3 : vector<32x512xf32>
    %cst = arith.constant dense<0.000000e+00> : vector<512xf32>
    %5 = vector.multi_reduction <add>, %4, %cst [0] : vector<32x512xf32> to vector<512xf32>
    %6 = vector.shape_cast %5 : vector<512xf32> to vector<1x512xf32>
    %c0_4 = arith.constant 0 : index
    %c0_5 = arith.constant 0 : index
    %7 = vector.load %arg5[%c0_4, %c0_5] : memref<1x1xf32, #tpu.memory_space<vmem>>, vector<1x1xf32>
    %8 = vector.extract %7[0, 0] : f32 from vector<1x1xf32>
    %9 = vector.broadcast %8 : f32 to vector<1x512xf32>
    %10 = arith.addf %6, %9 : vector<1x512xf32>
    %c0_6 = arith.constant 0 : index
    %c0_7 = arith.constant 0 : index
    %c0_8 = arith.constant 0 : index
    %11 = vector.load %arg3[%c0_6, %c0_7, %c0_8] : memref<1x32x1xf32, #tpu.memory_space<vmem>>, vector<1x32x1xf32>
    %12 = vector.shape_cast %11 : vector<1x32x1xf32> to vector<32x1xf32>
    %13 = arith.negf %10 : vector<1x512xf32>
    %14 = math.exp %13 : vector<1x512xf32>
    %cst_9 = arith.constant 1.000000e+00 : f32
    %15 = vector.broadcast %cst_9 : f32 to vector<1x512xf32>
    %16 = arith.addf %15, %14 : vector<1x512xf32>
    %17 = arith.divf %15, %16 : vector<1x512xf32>
    %18 = vector.broadcast %12 : vector<32x1xf32> to vector<32x512xf32>
    %19 = vector.broadcast %17 : vector<1x512xf32> to vector<32x512xf32>
    %20 = arith.addf %18, %19 : vector<32x512xf32>
    %21 = arith.mulf %1, %20 : vector<32x512xf32>
    %c0_10 = arith.constant 0 : index
    %c0_11 = arith.constant 0 : index
    %c0_12 = arith.constant 0 : index
    %22 = vector.load %arg6[%c0_10, %c0_11, %c0_12] : memref<1x32x512xf32, #tpu.memory_space<vmem>>, vector<1x32x512xf32>
    %23 = vector.shape_cast %22 : vector<1x32x512xf32> to vector<32x512xf32>
    %24 = vector.shape_cast %21 : vector<32x512xf32> to vector<1x32x512xf32>
    tpu.vector_store %arg6[%c0_10, %c0_11, %c0_12], %24 {strides = array<i32>} : memref<1x32x512xf32, #tpu.memory_space<vmem>>, vector<1x32x512xf32>,
    return
  }
  func.func @transform_0(%arg0: i32, %arg1: i32) -> (i32, i32, i32) {
    %c0_i32 = arith.constant 0 : i32
    %c0_i32_0 = arith.constant 0 : i32
    return %arg0, %c0_i32, %arg1 : i32, i32, i32
  }
  func.func @transform_1(%arg0: i32, %arg1: i32) -> (i32, i32, i32) {
    %c0_i32 = arith.constant 0 : i32
    %c0_i32_0 = arith.constant 0 : i32
    %c0_i32_1 = arith.constant 0 : i32
    return %arg0, %c0_i32, %c0_i32_0 : i32, i32, i32
  }
  func.func @transform_2(%arg0: i32, %arg1: i32) -> (i32, i32) {
    %c0_i32 = arith.constant 0 : i32
    %c0_i32_0 = arith.constant 0 : i32
    %c0_i32_1 = arith.constant 0 : i32
    return %c0_i32, %c0_i32_0 : i32, i32
  }
  func.func @transform_3(%arg0: i32, %arg1: i32) -> (i32, i32) {
    %c0_i32 = arith.constant 0 : i32
    %c0_i32_0 = arith.constant 0 : i32
    %c0_i32_1 = arith.constant 0 : i32
    return %c0_i32, %c0_i32_0 : i32, i32
  }
  func.func @transform_4(%arg0: i32, %arg1: i32) -> (i32, i32, i32) {
    %c0_i32 = arith.constant 0 : i32
    %c0_i32_0 = arith.constant 0 : i32
    return %arg0, %c0_i32, %arg1 : i32, i32, i32
  }
}

</mosaic_0001>

<llo_original>
// kernel: scse_forward.3
$region0: #{scse_forward.3}
  #allocation0 [shape = 'u32[]', space=smem, size = 0x4, offset = 0x4, fixed_abs, tag = 'smem constant byte address 0x4 - core index']
  #allocation1 [shape = 'u32[72,128]{1,0:T(1,128)}', space=vmem, size = 0x9000, scoped, tag = 'internal scratch']
  #allocation2 [shape = 'f32[32,1]{1,0:T(8,128)}', space=vmem, size = 0x4000, scoped, tag = 'scratch operand']
  #allocation3 [shape = 'f32[32,1]{1,0:T(8,128)}', space=vmem, size = 0x4000, scoped, tag = 'scratch operand']
  %s0 = inlined_call_operand.vmem [shape: f32[2,32,512], index: 0, kind: input, shape index: {}]
  %s1 = inlined_call_operand.vmem [shape: f32[2,1,32,2], index: 1, kind: output, shape index: {}]
  %s2 = sld [smem:[#allocation0]]
  $region45: #{scse_forward.3} parent=0
    _
  %s4 = ssub.s32 1, %s2
  %s5 = scalar_select 0, %s4, %s2
  loop: start=0, step=1, limit=4
  $region2: #{scse_forward.3} parent=0 // loop_pre_header
    _
  $region3: #{scse_forward.3} parent=0 // loop_header
    %s7 = sphi 0, %s11
    %p8 = scmp.ge.s32.totalorder %s7, 4
    %s14 = sphi 0, %s33
    %s15 = sphi 0, %s29
    %s16 = sphi 0, %s25
    %s17 = sphi 0, %s14
    %s18 = sphi 0, %s15
    %s19 = sphi 0, %s16
    %s20 = sphi 0, %s17
    %s21 = sphi 0, %s18
    %s22 = sphi 0, %s19
    %s40 = sphi 0, %s42
    %s43 = sphi 0, %s40
    %s44 = sphi 0, %s43
    %s60 = sphi 0, %s44
    %s68 = sphi 0, %s70
    %s71 = sphi 0, %s68
    %s72 = sphi 0, %s71
    %s88 = sphi 0, %s72
  $region4: #{scse_forward.3} parent=0 // loop_header_branch
    %10 = sbr.rel (%p8) target = $region8
  $region5: #{scse_forward.3} parent=0 // loop_body
    %s12 = ssub.s32 %s7, 1
    %s13 = ssub.s32 %s7, 2
    %s23 = sadd.s32 1, %s16
    %p24 = scmp.ge.s32.totalorder %s23, 1
    %s25 = scalar_select %p24, 0, %s23
    %s26 = sadd.s32 1, %s15
    %s27 = scalar_select %p24, %s26, %s15
    %p28 = scmp.ge.s32.totalorder %s27, 1
    %s29 = scalar_select %p28, 0, %s27
    %s30 = sadd.s32 1, %s14
    %s31 = scalar_select %p28, %s30, %s14
    %p32 = scmp.ge.s32.totalorder %s31, 2
    %s33 = scalar_select %p32, 0, %s31
    %s34 = sadd.s32 %s15, %s16
    %s35 = sadd.s32 %s29, %s25
    %s36 = ssub.s32 %s14, %s33
    %s37 = ssub.s32 %s34, %s35
    %s38 = sor.u32 %s36, %s37
    %p39 = scmp.eq.s32.totalorder %s38, 0
    %s41 = sadd.s32 %s40, 1
    %s42 = scalar_select %p39, %s40, %s41
    %p45 = pneg %p39
    %p46 = scmp.eq.s32.totalorder %s7, 1
    %p47 = por %p45, %p46
    %p48 = scmp.ne.s32.totalorder %s40, %s43
    %p49 = scmp.eq.s32.totalorder %s7, 0
    %p50 = por %p48, %p49
    %p51 = scmp.ne.s32.totalorder %s40, %s43
    %p52 = scmp.eq.s32.totalorder %s12, 1
    %p53 = por %p51, %p52
    %p54 = scmp.ne.s32.totalorder %s43, %s44
    %p55 = scmp.eq.s32.totalorder %s12, 0
    %p56 = por %p54, %p55
    %p57 = scmp.ne.s32.totalorder %s43, %s44
    %p58 = scmp.eq.s32.totalorder %s13, 1
    %p59 = por %p57, %p58
    %p61 = scmp.ne.s32.totalorder %s44, %s60
    %p62 = scmp.eq.s32.totalorder %s13, 0
    %p63 = por %p61, %p62
    %s64 = ssub.s32 %s14, %s33
    %s65 = ssub.s32 %s15, %s29
    %s66 = sor.u32 %s64, %s65
    %p67 = scmp.eq.s32.totalorder %s66, 0
    %s69 = sadd.s32 %s68, 1
    %s70 = scalar_select %p67, %s68, %s69
    %p73 = pneg %p67
    %p74 = scmp.eq.s32.totalorder %s7, 1
    %p75 = por %p73, %p74
    %p76 = scmp.ne.s32.totalorder %s68, %s71
    %p77 = scmp.eq.s32.totalorder %s7, 0
    %p78 = por %p76, %p77
    %p79 = scmp.ne.s32.totalorder %s68, %s71
    %p80 = scmp.eq.s32.totalorder %s12, 1
    %p81 = por %p79, %p80
    %p82 = scmp.ne.s32.totalorder %s71, %s72
    %p83 = scmp.eq.s32.totalorder %s12, 0
    %p84 = por %p82, %p83
    %p85 = scmp.ne.s32.totalorder %s71, %s72
    %p86 = scmp.eq.s32.totalorder %s13, 1
    %p87 = por %p85, %p86
    %p89 = scmp.ne.s32.totalorder %s72, %s88
    %p90 = scmp.eq.s32.totalorder %s13, 0
    %p91 = por %p89, %p90
    %p92 = scmp.le.s32.totalorder 1, %s7
    %p93 = scmp.lt.s32.totalorder %s7, 3
    %p94 = pnand %p92, %p93
    %p95 = pneg %p94
    // Predicated region
    $region9: #{scse_forward.3} parent=5 // pred_check
      _
    $region10: #{scse_forward.3} parent=5 // pred_check_branch
      %97 = sbr.rel (%p94) target = $region12
    $region11: #{scse_forward.3} parent=5 // pred_region
      %s98 = ssub.s32 %s7, 1
    $region12: #{scse_forward.3} parent=5 // pred_fallthru
      _
    %p99 = scmp.lt.s32.totalorder %s7, 2
    // Predicated region
    $region13: #{scse_forward.3} parent=5 // pred_check
      %p100 = pneg %p99
    $region14: #{scse_forward.3} parent=5 // pred_check_branch
      %102 = sbr.rel (%p100) target = $region16
    $region15: #{scse_forward.3} parent=5 // pred_region
      // Predicated region
      $region17: #{scse_forward.3} parent=15 // pred_check
        %p103 = pneg %p50
      $region18: #{scse_forward.3} parent=15 // pred_check_branch
        %105 = sbr.rel (%p103) target = $region20
      $region19: #{scse_forward.3} parent=15 // pred_region
        %s106 = sadd.s32 %s15, %s16
        %s107 = smul.u32 4, %s106
        %p108 = scmp.lt.s32.totalorder %s14, 1
        %s109 = scalar_select %p108, %s14, 1
        %p110 = scmp.lt.s32.totalorder %s107, 3
        %s111 = scalar_select %p110, %s107, 3
        %s112 = smul.addr %s109, 16
        %s113 = sadd.s32 %s111, %s112
        %s114 = smul.addr %s113, 8
        %s115 = scalar_lea.vmem %s0, %s114
        %s116 = sadd.s32 %s15, %s16
        %s117 = smul.u32 4, %s116
      $region20: #{scse_forward.3} parent=15 // pred_fallthru
        _
    $region16: #{scse_forward.3} parent=5 // pred_fallthru
      _
    %p118 = scmp.le.s32.totalorder 1, %s7
    %p119 = scmp.lt.s32.totalorder %s7, 3
    %p120 = pnand %p118, %p119
    %p121 = pneg %p120
    // Predicated region
    $region21: #{scse_forward.3} parent=5 // pred_check
      _
    $region22: #{scse_forward.3} parent=5 // pred_check_branch
      %123 = sbr.rel (%p120) target = $region24
    $region23: #{scse_forward.3} parent=5 // pred_region
      %s124 = ssub.s32 %s7, 1
      %s125 = sadd.s32 %s18, %s19
      %s126 = smul.u32 4, %s125
      %p127 = scmp.lt.s32.totalorder %s17, 1
      %s128 = scalar_select %p127, %s17, 1
      %p129 = scmp.lt.s32.totalorder %s126, 3
      %s130 = scalar_select %p129, %s126, 3
      %s131 = smul.addr %s128, 16
      %s132 = sadd.s32 %s130, %s131
      %s133 = smul.addr %s132, 8
      %s134 = scalar_lea.vmem %s0, %s133
      %p135 = pneg %p56
      %p136 = pneg %p53
      %p137 = pneg %p84
      %p138 = pneg %p81
      %p139 = scmp.lt.s32.totalorder %s17, 1
      %s140 = scalar_select %p139, %s17, 1
      %p141 = scmp.lt.s32.totalorder %s18, 0
      %s142 = scalar_select %p141, %s18, 0
      %s143 = smul.addr %s142, 4
      %s144 = smul.addr %s140, 4
      %s145 = sadd.s32 %s143, %s144
      %s146 = smul.addr %s145, 8
      %s147 = scalar_lea.vmem %s1, %s146
      %s148 = sadd.s32 %s18, %s19
      %s149 = smul.u32 4, %s148
      %p150 = scmp.lt.s32.totalorder %s17, 1
      %s151 = scalar_select %p150, %s17, 1
      %p152 = scmp.lt.s32.totalorder %s149, 3
      %s153 = scalar_select %p152, %s149, 3
      %s154 = smul.addr %s151, 16
      %s155 = sadd.s32 %s153, %s154
      %s156 = smul.addr %s155, 8
      %s157 = scalar_lea.vmem %s0, %s156
      %s158 = sadd.s32 %s18, %s19
      %s159 = smul.u32 4, %s158
      %p160 = scmp.lt.s32.totalorder %s17, 1
      %s161 = scalar_select %p160, %s17, 1
      %p162 = scmp.lt.s32.totalorder %s18, 0
      %s163 = scalar_select %p162, %s18, 0
      %s164 = smul.addr %s163, 4
      %s165 = smul.addr %s161, 4
      %s166 = sadd.s32 %s164, %s165
      %s167 = smul.addr %s166, 8
      %s168 = scalar_lea.vmem %s1, %s167
      %p169 = scmp.eq.s32.totalorder %s19, 0
      // Predicated region
      $region25: #{scse_forward.3} parent=23 // pred_check
        %p170 = pneg %p169
      $region26: #{scse_forward.3} parent=23 // pred_check_branch
        %172 = sbr.rel (%p170) target = $region28
      $region27: #{scse_forward.3} parent=23 // pred_region
        %vm173 = vcmask 7168
        %174 = vst.msk [vmem:[#allocation2] sm:$0xff] %vm173, 0.0
        %175 = vst.msk [vmem:[#allocation2 + $0x8] sm:$0xff] %vm173, 0.0
        %176 = vst.msk [vmem:[#allocation2 + $0x10] sm:$0xff] %vm173, 0.0
        %177 = vst.msk [vmem:[#allocation2 + $0x18] sm:$0xff] %vm173, 0.0
        %178 = vst.msk [vmem:[#allocation3] sm:$0xff] %vm173, -inf
        %179 = vst.msk [vmem:[#allocation3 + $0x8] sm:$0xff] %vm173, -inf
        %180 = vst.msk [vmem:[#allocation3 + $0x10] sm:$0xff] %vm173, -inf
        %181 = vst.msk [vmem:[#allocation3 + $0x18] sm:$0xff] %vm173, -inf
      $region28: #{scse_forward.3} parent=23 // pred_fallthru
        _
      %v182 = vld [vmem:[%s157] sm:$0xff]
      %v183 = vld [vmem:[%s157 + $0x8] sm:$0xff]
      %v184 = vld [vmem:[%s157 + $0x10] sm:$0xff]
      %v185 = vld [vmem:[%s157 + $0x18] sm:$0xff]
      %v186 = vld [vmem:[%s157 + $0x20] sm:$0xff]
      %v187 = vld [vmem:[%s157 + $0x28] sm:$0xff]
      %v188 = vld [vmem:[%s157 + $0x30] sm:$0xff]
      %v189 = vld [vmem:[%s157 + $0x38] sm:$0xff]
      %v190 = vld [vmem:[%s157 + $0x40] sm:$0xff]
      %v191 = vld [vmem:[%s157 + $0x48] sm:$0xff]
      %v192 = vld [vmem:[%s157 + $0x50] sm:$0xff]
      %v193 = vld [vmem:[%s157 + $0x58] sm:$0xff]
      %v194 = vld [vmem:[%s157 + $0x60] sm:$0xff]
      %v195 = vld [vmem:[%s157 + $0x68] sm:$0xff]
      %v196 = vld [vmem:[%s157 + $0x70] sm:$0xff]
      %v197 = vld [vmem:[%s157 + $0x78] sm:$0xff]
      %v198 = vld [vmem:[#allocation2] sm:$0xff]
      %v199 = vld [vmem:[#allocation2 + $0x8] sm:$0xff]
      %v200 = vld [vmem:[#allocation2 + $0x10] sm:$0xff]
      %v201 = vld [vmem:[#allocation2 + $0x18] sm:$0xff]
      %v202 = vadd.f32 %v182, %v183
      %v203 = vadd.f32 %v202, %v184
      %v204 = vadd.f32 %v203, %v185
      %205 = vadd.xlane.f32.xlu0 %v204
      %v206 = vpop.xlane.xlu0 %205
      %v207 = vadd.f32 %v186, %v187
      %v208 = vadd.f32 %v207, %v188
      %v209 = vadd.f32 %v208, %v189
      %210 = vadd.xlane.f32.xlu0 %v209
      %v211 = vpop.xlane.xlu0 %210
      %v212 = vadd.f32 %v190, %v191
      %v213 = vadd.f32 %v212, %v192
      %v214 = vadd.f32 %v213, %v193
      %215 = vadd.xlane.f32.xlu0 %v214
      %v216 = vpop.xlane.xlu0 %215
      %v217 = vadd.f32 %v194, %v195
      %v218 = vadd.f32 %v217, %v196
      %v219 = vadd.f32 %v218, %v197
      %220 = vadd.xlane.f32.xlu0 %v219
      %v221 = vpop.xlane.xlu0 %220
      %v222 = vadd.f32 %v198, %v206
      %v223 = vadd.f32 %v199, %v211
      %v224 = vadd.f32 %v200, %v216
      %v225 = vadd.f32 %v201, %v221
      %vm226 = vcmask 7168
      %227 = vst.msk [vmem:[#allocation2] sm:$0xff] %vm226, %v222
      %228 = vst.msk [vmem:[#allocation2 + $0x8] sm:$0xff] %vm226, %v223
      %229 = vst.msk [vmem:[#allocation2 + $0x10] sm:$0xff] %vm226, %v224
      %230 = vst.msk [vmem:[#allocation2 + $0x18] sm:$0xff] %vm226, %v225
      %v231 = vld [vmem:[#allocation3] sm:$0xff]
      %v232 = vld [vmem:[#allocation3 + $0x8] sm:$0xff]
      %v233 = vld [vmem:[#allocation3 + $0x10] sm:$0xff]
      %v234 = vld [vmem:[#allocation3 + $0x18] sm:$0xff]
      %v235 = vmax.f32 %v182, %v183
      %v236 = vmax.f32 %v235, %v184
      %v237 = vmax.f32 %v236, %v185
      %238 = vmax.xlane.f32.xlu0 %v237
      %v239 = vpop.xlane.xlu0 %238
      %v240 = vmax.f32 %v186, %v187
      %v241 = vmax.f32 %v240, %v188
      %v242 = vmax.f32 %v241, %v189
      %243 = vmax.xlane.f32.xlu0 %v242
      %v244 = vpop.xlane.xlu0 %243
      %v245 = vmax.f32 %v190, %v191
      %v246 = vmax.f32 %v245, %v192
      %v247 = vmax.f32 %v246, %v193
      %248 = vmax.xlane.f32.xlu0 %v247
      %v249 = vpop.xlane.xlu0 %248
      %v250 = vmax.f32 %v194, %v195
      %v251 = vmax.f32 %v250, %v196
      %v252 = vmax.f32 %v251, %v197
      %253 = vmax.xlane.f32.xlu0 %v252
      %v254 = vpop.xlane.xlu0 %253
      %v255 = vmax.f32 %v231, %v239
      %v256 = vmax.f32 %v232, %v244
      %v257 = vmax.f32 %v233, %v249
      %v258 = vmax.f32 %v234, %v254
      %259 = vst.msk [vmem:[#allocation3] sm:$0xff] %vm226, %v255
      %260 = vst.msk [vmem:[#allocation3 + $0x8] sm:$0xff] %vm226, %v256
      %261 = vst.msk [vmem:[#allocation3 + $0x10] sm:$0xff] %vm226, %v257
      %262 = vst.msk [vmem:[#allocation3 + $0x18] sm:$0xff] %vm226, %v258
      // Predicated region
      $region29: #{scse_forward.3} parent=23 // pred_check
        %p263 = pneg %p169
      $region30: #{scse_forward.3} parent=23 // pred_check_branch
        %265 = sbr.rel (%p263) target = $region32
      $region31: #{scse_forward.3} parent=23 // pred_region
        %v266 = vld [vmem:[#allocation2] sm:$0xff]
        %v267 = vld [vmem:[#allocation2 + $0x8] sm:$0xff]
        %v268 = vld [vmem:[#allocation2 + $0x10] sm:$0xff]
        %v269 = vld [vmem:[#allocation2 + $0x18] sm:$0xff]
        %270 = vst.msk [vmem:[%s168] sm:$0xff] %vm226, %v266
        %271 = vst.msk [vmem:[%s168 + $0x8] sm:$0xff] %vm226, %v267
        %272 = vst.msk [vmem:[%s168 + $0x10] sm:$0xff] %vm226, %v268
        %273 = vst.msk [vmem:[%s168 + $0x18] sm:$0xff] %vm226, %v269
        %v274 = vld [vmem:[#allocation3] sm:$0xff]
        %v275 = vld [vmem:[#allocation3 + $0x8] sm:$0xff]
        %v276 = vld [vmem:[#allocation3 + $0x10] sm:$0xff]
        %v277 = vld [vmem:[#allocation3 + $0x18] sm:$0xff]
        %282 = vrot.lane.b32.xlu0 %v274, 1
        %v283 = vpop.permute.xlu0 %282
        %284 = vrot.lane.b32.xlu0 %v275, 1
        %v285 = vpop.permute.xlu0 %284
        %286 = vrot.lane.b32.xlu0 %v276, 1
        %v287 = vpop.permute.xlu0 %286
        %288 = vrot.lane.b32.xlu0 %v277, 1
        %v289 = vpop.permute.xlu0 %288
        %vm294 = vcmask 15368
        %295 = vst.msk [vmem:[%s168] sm:$0xff] %vm294, %v283
        %296 = vst.msk [vmem:[%s168 + $0x8] sm:$0xff] %vm294, %v285
        %297 = vst.msk [vmem:[%s168 + $0x10] sm:$0xff] %vm294, %v287
        %298 = vst.msk [vmem:[%s168 + $0x18] sm:$0xff] %vm294, %v289
      $region32: #{scse_forward.3} parent=23 // pred_fallthru
        _
      %p299 = scmp.lt.s32.totalorder %s17, 1
      %s300 = scalar_select %p299, %s17, 1
      %p301 = scmp.lt.s32.totalorder %s18, 0
      %s302 = scalar_select %p301, %s18, 0
      %s303 = smul.addr %s302, 4
      %s304 = smul.addr %s300, 4
      %s305 = sadd.s32 %s303, %s304
      %s306 = smul.addr %s305, 8
      %s307 = scalar_lea.vmem %s1, %s306
      // Predicated region
      $region33: #{scse_forward.3} parent=23 // pred_check
        %p308 = pneg %p81
      $region34: #{scse_forward.3} parent=23 // pred_check_branch
        %310 = sbr.rel (%p308) target = $region36
      $region35: #{scse_forward.3} parent=23 // pred_region
        _
      $region36: #{scse_forward.3} parent=23 // pred_fallthru
        _
    $region24: #{scse_forward.3} parent=5 // pred_fallthru
      _
    %p311 = scmp.le.s32.totalorder 2, %s7
    // Predicated region
    $region37: #{scse_forward.3} parent=5 // pred_check
      %p312 = pneg %p311
    $region38: #{scse_forward.3} parent=5 // pred_check_branch
      %314 = sbr.rel (%p312) target = $region40
    $region39: #{scse_forward.3} parent=5 // pred_region
      %s315 = ssub.s32 %s7, 2
      // Predicated region
      $region41: #{scse_forward.3} parent=39 // pred_check
        %p316 = pneg %p87
      $region42: #{scse_forward.3} parent=39 // pred_check_branch
        %318 = sbr.rel (%p316) target = $region44
      $region43: #{scse_forward.3} parent=39 // pred_region
        %p319 = scmp.lt.s32.totalorder %s20, 1
        %s320 = scalar_select %p319, %s20, 1
        %p321 = scmp.lt.s32.totalorder %s21, 0
        %s322 = scalar_select %p321, %s21, 0
        %s323 = smul.addr %s322, 4
        %s324 = smul.addr %s320, 4
        %s325 = sadd.s32 %s323, %s324
        %s326 = smul.addr %s325, 8
        %s327 = scalar_lea.vmem %s1, %s326
      $region44: #{scse_forward.3} parent=39 // pred_fallthru
        _
    $region40: #{scse_forward.3} parent=5 // pred_fallthru
      _
  $region6: #{scse_forward.3} parent=0 // loop_footer
    %s11 = sadd.s32 1, %s7
  $region7: #{scse_forward.3} parent=0 // loop_footer_branch
    %6 = sbr.rel target = $region3
  $region8: #{scse_forward.3} parent=0 // loop_exit
    _

// kernel: scse_forward.4
$region0: #{scse_forward.4}
  #allocation0 [shape = 'u32[]', space=smem, size = 0x4, offset = 0x4, fixed_abs, tag = 'smem constant byte address 0x4 - core index']
  #allocation1 [shape = 'u32[72,128]{1,0:T(1,128)}', space=vmem, size = 0x9000, scoped, tag = 'internal scratch']
  %s0 = inlined_call_operand.vmem [shape: f32[2,1,32,2], index: 0, kind: input, shape index: {}]
  %s1 = inlined_call_operand.vmem [shape: f32[16,32], index: 1, kind: input, shape index: {}]
  %s2 = inlined_call_operand.vmem [shape: f32[16,1], index: 2, kind: input, shape index: {}]
  %s3 = inlined_call_operand.vmem [shape: f32[32,16], index: 3, kind: input, shape index: {}]
  %s4 = inlined_call_operand.vmem [shape: f32[32,1], index: 4, kind: input, shape index: {}]
  %s5 = inlined_call_operand.vmem [shape: f32[2,32,1], index: 5, kind: output, shape index: {}]
  %s6 = sld [smem:[#allocation0]]
  $region53: #{scse_forward.4} parent=0
    _
  %s8 = ssub.s32 1, %s6
  %s9 = scalar_select 0, %s8, %s6
  loop: start=0, step=1, limit=4
  $region2: #{scse_forward.4} parent=0 // loop_pre_header
    _
  $region3: #{scse_forward.4} parent=0 // loop_header
    %s11 = sphi 0, %s15
    %p12 = scmp.ge.s32.totalorder %s11, 4
    %s21 = sphi 0, %s23
    %s24 = sphi 0, %s21
    %s25 = sphi 0, %s24
    %s41 = sphi 0, %s25
    %s45 = sphi 0, %s45
    %s47 = sphi 0, %s45
    %s48 = sphi 0, %s47
    %s62 = sphi 0, %s48
    %s66 = sphi 0, %s66
    %s68 = sphi 0, %s66
    %s69 = sphi 0, %s68
    %s83 = sphi 0, %s69
    %s87 = sphi 0, %s87
    %s89 = sphi 0, %s87
    %s90 = sphi 0, %s89
    %s104 = sphi 0, %s90
    %s108 = sphi 0, %s108
    %s110 = sphi 0, %s108
    %s111 = sphi 0, %s110
    %s125 = sphi 0, %s111
    %s131 = sphi 0, %s133
    %s134 = sphi 0, %s131
    %s135 = sphi 0, %s134
    %s151 = sphi 0, %s135
  $region4: #{scse_forward.4} parent=0 // loop_header_branch
    %14 = sbr.rel (%p12) target = $region8
  $region5: #{scse_forward.4} parent=0 // loop_body
    %s16 = ssub.s32 %s11, 1
    %s17 = ssub.s32 %s11, 2
    %s18 = sadd.s32 %s11, 1
    %s19 = ssub.s32 %s11, %s18
    %p20 = scmp.eq.s32.totalorder %s19, 0
    %s22 = sadd.s32 %s21, 1
    %s23 = scalar_select %p20, %s21, %s22
    %p26 = pneg %p20
    %p27 = scmp.eq.s32.totalorder %s11, 1
    %p28 = por %p26, %p27
    %p29 = scmp.ne.s32.totalorder %s21, %s24
    %p30 = scmp.eq.s32.totalorder %s11, 0
    %p31 = por %p29, %p30
    %p32 = scmp.ne.s32.totalorder %s21, %s24
    %p33 = scmp.eq.s32.totalorder %s16, 1
    %p34 = por %p32, %p33
    %p35 = scmp.ne.s32.totalorder %s24, %s25
    %p36 = scmp.eq.s32.totalorder %s16, 0
    %p37 = por %p35, %p36
    %p38 = scmp.ne.s32.totalorder %s24, %s25
    %p39 = scmp.eq.s32.totalorder %s17, 1
    %p40 = por %p38, %p39
    %p42 = scmp.ne.s32.totalorder %s25, %s41
    %p43 = scmp.eq.s32.totalorder %s17, 0
    %p44 = por %p42, %p43
    %s46 = sadd.s32 %s45, 1
    %p49 = scmp.eq.s32.totalorder %s11, 1
    %p50 = scmp.ne.s32.totalorder %s45, %s47
    %p51 = scmp.eq.s32.totalorder %s11, 0
    %p52 = por %p50, %p51
    %p53 = scmp.ne.s32.totalorder %s45, %s47
    %p54 = scmp.eq.s32.totalorder %s16, 1
    %p55 = por %p53, %p54
    %p56 = scmp.ne.s32.totalorder %s47, %s48
    %p57 = scmp.eq.s32.totalorder %s16, 0
    %p58 = por %p56, %p57
    %p59 = scmp.ne.s32.totalorder %s47, %s48
    %p60 = scmp.eq.s32.totalorder %s17, 1
    %p61 = por %p59, %p60
    %p63 = scmp.ne.s32.totalorder %s48, %s62
    %p64 = scmp.eq.s32.totalorder %s17, 0
    %p65 = por %p63, %p64
    %s67 = sadd.s32 %s66, 1
    %p70 = scmp.eq.s32.totalorder %s11, 1
    %p71 = scmp.ne.s32.totalorder %s66, %s68
    %p72 = scmp.eq.s32.totalorder %s11, 0
    %p73 = por %p71, %p72
    %p74 = scmp.ne.s32.totalorder %s66, %s68
    %p75 = scmp.eq.s32.totalorder %s16, 1
    %p76 = por %p74, %p75
    %p77 = scmp.ne.s32.totalorder %s68, %s69
    %p78 = scmp.eq.s32.totalorder %s16, 0
    %p79 = por %p77, %p78
    %p80 = scmp.ne.s32.totalorder %s68, %s69
    %p81 = scmp.eq.s32.totalorder %s17, 1
    %p82 = por %p80, %p81
    %p84 = scmp.ne.s32.totalorder %s69, %s83
    %p85 = scmp.eq.s32.totalorder %s17, 0
    %p86 = por %p84, %p85
    %s88 = sadd.s32 %s87, 1
    %p91 = scmp.eq.s32.totalorder %s11, 1
    %p92 = scmp.ne.s32.totalorder %s87, %s89
    %p93 = scmp.eq.s32.totalorder %s11, 0
    %p94 = por %p92, %p93
    %p95 = scmp.ne.s32.totalorder %s87, %s89
    %p96 = scmp.eq.s32.totalorder %s16, 1
    %p97 = por %p95, %p96
    %p98 = scmp.ne.s32.totalorder %s89, %s90
    %p99 = scmp.eq.s32.totalorder %s16, 0
    %p100 = por %p98, %p99
    %p101 = scmp.ne.s32.totalorder %s89, %s90
    %p102 = scmp.eq.s32.totalorder %s17, 1
    %p103 = por %p101, %p102
    %p105 = scmp.ne.s32.totalorder %s90, %s104
    %p106 = scmp.eq.s32.totalorder %s17, 0
    %p107 = por %p105, %p106
    %s109 = sadd.s32 %s108, 1
    %p112 = scmp.eq.s32.totalorder %s11, 1
    %p113 = scmp.ne.s32.totalorder %s108, %s110
    %p114 = scmp.eq.s32.totalorder %s11, 0
    %p115 = por %p113, %p114
    %p116 = scmp.ne.s32.totalorder %s108, %s110
    %p117 = scmp.eq.s32.totalorder %s16, 1
    %p118 = por %p116, %p117
    %p119 = scmp.ne.s32.totalorder %s110, %s111
    %p120 = scmp.eq.s32.totalorder %s16, 0
    %p121 = por %p119, %p120
    %p122 = scmp.ne.s32.totalorder %s110, %s111
    %p123 = scmp.eq.s32.totalorder %s17, 1
    %p124 = por %p122, %p123
    %p126 = scmp.ne.s32.totalorder %s111, %s125
    %p127 = scmp.eq.s32.totalorder %s17, 0
    %p128 = por %p126, %p127
    %s129 = ssub.s32 %s11, %s18
    %p130 = scmp.eq.s32.totalorder %s129, 0
    %s132 = sadd.s32 %s131, 1
    %s133 = scalar_select %p130, %s131, %s132
    %p136 = pneg %p130
    %p137 = scmp.eq.s32.totalorder %s11, 1
    %p138 = por %p136, %p137
    %p139 = scmp.ne.s32.totalorder %s131, %s134
    %p140 = scmp.eq.s32.totalorder %s11, 0
    %p141 = por %p139, %p140
    %p142 = scmp.ne.s32.totalorder %s131, %s134
    %p143 = scmp.eq.s32.totalorder %s16, 1
    %p144 = por %p142, %p143
    %p145 = scmp.ne.s32.totalorder %s134, %s135
    %p146 = scmp.eq.s32.totalorder %s16, 0
    %p147 = por %p145, %p146
    %p148 = scmp.ne.s32.totalorder %s134, %s135
    %p149 = scmp.eq.s32.totalorder %s17, 1
    %p150 = por %p148, %p149
    %p152 = scmp.ne.s32.totalorder %s135, %s151
    %p153 = scmp.eq.s32.totalorder %s17, 0
    %p154 = por %p152, %p153
    %p155 = scmp.le.s32.totalorder 1, %s11
    %p156 = scmp.lt.s32.totalorder %s11, 3
    %p157 = pnand %p155, %p156
    %p158 = pneg %p157
    // Predicated region
    $region9: #{scse_forward.4} parent=5 // pred_check
      _
    $region10: #{scse_forward.4} parent=5 // pred_check_branch
      %160 = sbr.rel (%p157) target = $region12
    $region11: #{scse_forward.4} parent=5 // pred_region
      %s161 = ssub.s32 %s11, 1
      // Predicated region
      $region13: #{scse_forward.4} parent=11 // pred_check
        %p162 = pneg %p58
      $region14: #{scse_forward.4} parent=11 // pred_check_branch
        %164 = sbr.rel (%p162) target = $region16
      $region15: #{scse_forward.4} parent=11 // pred_region
        _
      $region16: #{scse_forward.4} parent=11 // pred_fallthru
        _
      // Predicated region
      $region17: #{scse_forward.4} parent=11 // pred_check
        %p165 = pneg %p79
      $region18: #{scse_forward.4} parent=11 // pred_check_branch
        %167 = sbr.rel (%p165) target = $region20
      $region19: #{scse_forward.4} parent=11 // pred_region
        _
      $region20: #{scse_forward.4} parent=11 // pred_fallthru
        _
      // Predicated region
      $region21: #{scse_forward.4} parent=11 // pred_check
        %p168 = pneg %p100
      $region22: #{scse_forward.4} parent=11 // pred_check_branch
        %170 = sbr.rel (%p168) target = $region24
      $region23: #{scse_forward.4} parent=11 // pred_region
        _
      $region24: #{scse_forward.4} parent=11 // pred_fallthru
        _
      // Predicated region
      $region25: #{scse_forward.4} parent=11 // pred_check
        %p171 = pneg %p121
      $region26: #{scse_forward.4} parent=11 // pred_check_branch
        %173 = sbr.rel (%p171) target = $region28
      $region27: #{scse_forward.4} parent=11 // pred_region
        _
      $region28: #{scse_forward.4} parent=11 // pred_fallthru
        _
    $region12: #{scse_forward.4} parent=5 // pred_fallthru
      _
    %p174 = scmp.lt.s32.totalorder %s11, 2
    // Predicated region
    $region29: #{scse_forward.4} parent=5 // pred_check
      %p175 = pneg %p174
    $region30: #{scse_forward.4} parent=5 // pred_check_branch
      %177 = sbr.rel (%p175) target = $region32
    $region31: #{scse_forward.4} parent=5 // pred_region
      // Predicated region
      $region33: #{scse_forward.4} parent=31 // pred_check
        %p178 = pneg %p31
      $region34: #{scse_forward.4} parent=31 // pred_check_branch
        %180 = sbr.rel (%p178) target = $region36
      $region35: #{scse_forward.4} parent=31 // pred_region
        %p181 = scmp.lt.s32.totalorder %s11, 1
        %s182 = scalar_select %p181, %s11, 1
        %s183 = smul.addr %s182, 4
        %s184 = smul.addr %s183, 8
        %s185 = scalar_lea.vmem %s0, %s184
      $region36: #{scse_forward.4} parent=31 // pred_fallthru
        _
    $region32: #{scse_forward.4} parent=5 // pred_fallthru
      _
    %p186 = scmp.le.s32.totalorder 1, %s11
    %p187 = scmp.lt.s32.totalorder %s11, 3
    %p188 = pnand %p186, %p187
    %p189 = pneg %p188
    // Predicated region
    $region37: #{scse_forward.4} parent=5 // pred_check
      _
    $region38: #{scse_forward.4} parent=5 // pred_check_branch
      %191 = sbr.rel (%p188) target = $region40
    $region39: #{scse_forward.4} parent=5 // pred_region
      %s192 = ssub.s32 %s11, 1
      %p193 = scmp.lt.s32.totalorder %s16, 1
      %s194 = scalar_select %p193, %s16, 1
      %s195 = smul.addr %s194, 4
      %s196 = smul.addr %s195, 8
      %s197 = scalar_lea.vmem %s0, %s196
      %p198 = pneg %p37
      %p199 = pneg %p34
      %p200 = pneg %p58
      %p201 = pneg %p55
      %p202 = pneg %p79
      %p203 = pneg %p76
      %p204 = pneg %p100
      %p205 = pneg %p97
      %p206 = pneg %p121
      %p207 = pneg %p118
      %p208 = pneg %p147
      %p209 = pneg %p144
      %p210 = scmp.lt.s32.totalorder %s16, 1
      %s211 = scalar_select %p210, %s16, 1
      %s212 = smul.addr %s211, 4
      %s213 = smul.addr %s212, 8
      %s214 = scalar_lea.vmem %s5, %s213
      %p215 = scmp.lt.s32.totalorder %s16, 1
      %s216 = scalar_select %p215, %s16, 1
      %s217 = smul.addr %s216, 4
      %s218 = smul.addr %s217, 8
      %s219 = scalar_lea.vmem %s0, %s218
      %p220 = scmp.lt.s32.totalorder %s16, 1
      %s221 = scalar_select %p220, %s16, 1
      %s222 = smul.addr %s221, 4
      %s223 = smul.addr %s222, 8
      %s224 = scalar_lea.vmem %s5, %s223
      %v225 = vld [vmem:[%s219] sm:$0xff]
      %v226 = vld [vmem:[%s219 + $0x8] sm:$0xff]
      %v227 = vld [vmem:[%s219 + $0x10] sm:$0xff]
      %v228 = vld [vmem:[%s219 + $0x18] sm:$0xff]
      %v229 = vmul.f32 %v225, 0.001953125
      %v230 = vmul.f32 %v226, 0.001953125
      %v231 = vmul.f32 %v227, 0.001953125
      %v232 = vmul.f32 %v228, 0.001953125
      %vm233 = vcmask 7168
      %v234 = vsel %vm233, %v229, %v225
      %v235 = vsel %vm233, %v230, %v226
      %v236 = vsel %vm233, %v231, %v227
      %v237 = vsel %vm233, %v232, %v228
      %v238 = vld [vmem:[%s1] sm:$0xff]
      %v239 = vld [vmem:[%s1 + $0x8] sm:$0xff]
      %v240 = vld [vmem:[%s2] sm:$0xff]
      %v241 = vld [vmem:[%s2 + $0x8] sm:$0xff]
      %243 = vset.pattern.permute.xlu0 0
      %244 = vperm.xlu0 %243, %v240
      %v245 = vpop.permute.xlu0 %244
      %248 = vset.pattern.permute.xlu0 0
      %249 = vperm.xlu0 %248, %v241
      %v250 = vpop.permute.xlu0 %249
      %vm252 = vcmask 261120
      %v254 = vsel %vm252, %v238, 0
      %v257 = vsel %vm252, %v239, 0
      %259 = vmatpush.msra.mxu0 0.0
      %260 = vmatpush.msra.mxu0 0.0
      %261 = vmatpush.msra.mxu0 0.0
      %262 = vmatpush.msra.mxu0 0.0
      %263 = vmatpush.msra.mxu0 0.0
      %264 = vmatpush.msra.mxu0 0.0
      %265 = vmatpush.msra.mxu0 0.0
      %266 = vmatpush.msra.mxu0 0.0
      %267 = vmatpush.msra.mxu0 0.0
      %268 = vmatpush.msra.mxu0 0.0
      %269 = vmatpush.msra.mxu0 0.0
      %270 = vmatpush.msra.mxu0 0.0
      %271 = vmatpush.msra.mxu0 %v237
      %272 = vmatpush.msra.mxu0 %v236
      %273 = vmatpush.msra.mxu0 %v235
      %274 = vmatpush.msra.mxu0 %v234
      %275 = vmatmul.f32.gmra.mxu0 %v254
      %v276 = vpop.f32.mrf.mxu0
      %v277 = vadd.f32 %v245, %v276
      %278 = vmatmul.f32.gmra.mxu0 %v257
      %v279 = vpop.f32.mrf.mxu0
      %v280 = vadd.f32 %v250, %v279
      %281 = vdwg.mxu0
      %v282 = vmax.f32 %v277, 0.0
      %v283 = vmax.f32 %v280, 0.0
      %v284 = vld [vmem:[%s3] sm:$0xff]
      %v285 = vld [vmem:[%s3 + $0x8] sm:$0xff]
      %v286 = vld [vmem:[%s3 + $0x10] sm:$0xff]
      %v287 = vld [vmem:[%s3 + $0x18] sm:$0xff]
      %v288 = vld [vmem:[%s4] sm:$0xff]
      %v289 = vld [vmem:[%s4 + $0x8] sm:$0xff]
      %v290 = vld [vmem:[%s4 + $0x10] sm:$0xff]
      %v291 = vld [vmem:[%s4 + $0x18] sm:$0xff]
      %293 = vset.pattern.permute.xlu0 0
      %294 = vperm.xlu0 %293, %v288
      %v295 = vpop.permute.xlu0 %294
      %298 = vset.pattern.permute.xlu0 0
      %299 = vperm.xlu0 %298, %v289
      %v300 = vpop.permute.xlu0 %299
      %303 = vset.pattern.permute.xlu0 0
      %304 = vperm.xlu0 %303, %v290
      %v305 = vpop.permute.xlu0 %304
      %308 = vset.pattern.permute.xlu0 0
      %309 = vperm.xlu0 %308, %v291
      %v310 = vpop.permute.xlu0 %309
      %vm312 = vcmask 130048
      %v314 = vsel %vm312, %v284, 0
      %v317 = vsel %vm312, %v285, 0
      %v320 = vsel %vm312, %v286, 0
      %v323 = vsel %vm312, %v287, 0
      %325 = vmatpush.msra.mxu0 0.0
      %326 = vmatpush.msra.mxu0 0.0
      %327 = vmatpush.msra.mxu0 0.0
      %328 = vmatpush.msra.mxu0 0.0
      %329 = vmatpush.msra.mxu0 0.0
      %330 = vmatpush.msra.mxu0 0.0
      %331 = vmatpush.msra.mxu0 0.0
      %332 = vmatpush.msra.mxu0 0.0
      %333 = vmatpush.msra.mxu0 0.0
      %334 = vmatpush.msra.mxu0 0.0
      %335 = vmatpush.msra.mxu0 0.0
      %336 = vmatpush.msra.mxu0 0.0
      %337 = vmatpush.msra.mxu0 0.0
      %338 = vmatpush.msra.mxu0 0.0
      %339 = vmatpush.msra.mxu0 %v283
      %340 = vmatpush.msra.mxu0 %v282
      %341 = vmatmul.f32.gmra.mxu0 %v314
      %v342 = vpop.f32.mrf.mxu0
      %v343 = vadd.f32 %v295, %v342
      %344 = vmatmul.f32.gmra.mxu0 %v317
      %v345 = vpop.f32.mrf.mxu0
      %v346 = vadd.f32 %v300, %v345
      %347 = vmatmul.f32.gmra.mxu0 %v320
      %v348 = vpop.f32.mrf.mxu0
      %v349 = vadd.f32 %v305, %v348
      %350 = vmatmul.f32.gmra.mxu0 %v323
      %v351 = vpop.f32.mrf.mxu0
      %v352 = vadd.f32 %v310, %v351
      %353 = vdwg.mxu0
      %358 = vrot.lane.b32.xlu0 %v343, 127
      %v359 = vpop.permute.xlu0 %358
      %360 = vrot.lane.b32.xlu0 %v346, 127
      %v361 = vpop.permute.xlu0 %360
      %362 = vrot.lane.b32.xlu0 %v349, 127
      %v363 = vpop.permute.xlu0 %362
      %364 = vrot.lane.b32.xlu0 %v352, 127
      %v365 = vpop.permute.xlu0 %364
      %v370 = vadd.f32 %v343, %v359
      %v371 = vadd.f32 %v346, %v361
      %v372 = vadd.f32 %v349, %v363
      %v373 = vadd.f32 %v352, %v365
      %v374 = vxor.u32 %v370, 2147483648
      %v375 = vxor.u32 %v371, 2147483648
      %v376 = vxor.u32 %v372, 2147483648
      %v377 = vxor.u32 %v373, 2147483648
      %v378 = vmul.f32 %v374, 1.442695
      %v379 = vpow.pop %v378
      %v380 = vmul.f32 %v375, 1.442695
      %v381 = vpow.pop %v380
      %v382 = vmul.f32 %v376, 1.442695
      %v383 = vpow.pop %v382
      %v384 = vmul.f32 %v377, 1.442695
      %v385 = vpow.pop %v384
      %v386 = vadd.f32 %v379, 1.0
      %v387 = vadd.f32 %v381, 1.0
      %v388 = vadd.f32 %v383, 1.0
      %v389 = vadd.f32 %v385, 1.0
      %v390 = vrcp.pop %v386
      %v391 = vmul.f32 %v386, %v390
      %v392 = vsub.f32 1.0, %v391
      %v393 = vmul.f32 %v390, %v392
      %v394 = vadd.f32 %v390, %v393
      %vm395 = vweird.f32 %v386
      %vm396 = vweird.f32 %v390
      %vm397 = vmor %vm395, %vm396
      %v398 = vsel %vm397, %v390, %v394
      %v399 = vand.u32 2147483647, %v386
      %vm400 = vcmp.eq.f32.partialorder %v399, 8.507059e+37
      %v401 = vand.u32 %v386, 2147483648
      %v402 = vor.u32 1.1754944e-38, %v401
      %v403 = vsel %vm400, %v402, %v398
      %v404 = vmul.f32 1.0, %v403
      %v405 = vrcp.pop %v387
      %v406 = vmul.f32 %v387, %v405
      %v407 = vsub.f32 1.0, %v406
      %v408 = vmul.f32 %v405, %v407
      %v409 = vadd.f32 %v405, %v408
      %vm410 = vweird.f32 %v387
      %vm411 = vweird.f32 %v405
      %vm412 = vmor %vm410, %vm411
      %v413 = vsel %vm412, %v405, %v409
      %v414 = vand.u32 2147483647, %v387
      %vm415 = vcmp.eq.f32.partialorder %v414, 8.507059e+37
      %v416 = vand.u32 %v387, 2147483648
      %v417 = vor.u32 1.1754944e-38, %v416
      %v418 = vsel %vm415, %v417, %v413
      %v419 = vmul.f32 1.0, %v418
      %v420 = vrcp.pop %v388
      %v421 = vmul.f32 %v388, %v420
      %v422 = vsub.f32 1.0, %v421
      %v423 = vmul.f32 %v420, %v422
      %v424 = vadd.f32 %v420, %v423
      %vm425 = vweird.f32 %v388
      %vm426 = vweird.f32 %v420
      %vm427 = vmor %vm425, %vm426
      %v428 = vsel %vm427, %v420, %v424
      %v429 = vand.u32 2147483647, %v388
      %vm430 = vcmp.eq.f32.partialorder %v429, 8.507059e+37
      %v431 = vand.u32 %v388, 2147483648
      %v432 = vor.u32 1.1754944e-38, %v431
      %v433 = vsel %vm430, %v432, %v428
      %v434 = vmul.f32 1.0, %v433
      %v435 = vrcp.pop %v389
      %v436 = vmul.f32 %v389, %v435
      %v437 = vsub.f32 1.0, %v436
      %v438 = vmul.f32 %v435, %v437
      %v439 = vadd.f32 %v435, %v438
      %vm440 = vweird.f32 %v389
      %vm441 = vweird.f32 %v435
      %vm442 = vmor %vm440, %vm441
      %v443 = vsel %vm442, %v435, %v439
      %v444 = vand.u32 2147483647, %v389
      %vm445 = vcmp.eq.f32.partialorder %v444, 8.507059e+37
      %v446 = vand.u32 %v389, 2147483648
      %v447 = vor.u32 1.1754944e-38, %v446
      %v448 = vsel %vm445, %v447, %v443
      %v449 = vmul.f32 1.0, %v448
      %450 = vst.msk [vmem:[%s224] sm:$0xff] %vm233, %v404
      %451 = vst.msk [vmem:[%s224 + $0x8] sm:$0xff] %vm233, %v419
      %452 = vst.msk [vmem:[%s224 + $0x10] sm:$0xff] %vm233, %v434
      %453 = vst.msk [vmem:[%s224 + $0x18] sm:$0xff] %vm233, %v449
      %p454 = scmp.lt.s32.totalorder %s16, 1
      %s455 = scalar_select %p454, %s16, 1
      %s456 = smul.addr %s455, 4
      %s457 = smul.addr %s456, 8
      %s458 = scalar_lea.vmem %s5, %s457
      // Predicated region
      $region41: #{scse_forward.4} parent=39 // pred_check
        %p459 = pneg %p144
      $region42: #{scse_forward.4} parent=39 // pred_check_branch
        %461 = sbr.rel (%p459) target = $region44
      $region43: #{scse_forward.4} parent=39 // pred_region
        _
      $region44: #{scse_forward.4} parent=39 // pred_fallthru
        _
    $region40: #{scse_forward.4} parent=5 // pred_fallthru
      _
    %p462 = scmp.le.s32.totalorder 2, %s11
    // Predicated region
    $region45: #{scse_forward.4} parent=5 // pred_check
      %p463 = pneg %p462
    $region46: #{scse_forward.4} parent=5 // pred_check_branch
      %465 = sbr.rel (%p463) target = $region48
    $region47: #{scse_forward.4} parent=5 // pred_region
      %s466 = ssub.s32 %s11, 2
      // Predicated region
      $region49: #{scse_forward.4} parent=47 // pred_check
        %p467 = pneg %p150
      $region50: #{scse_forward.4} parent=47 // pred_check_branch
        %469 = sbr.rel (%p467) target = $region52
      $region51: #{scse_forward.4} parent=47 // pred_region
        %p470 = scmp.lt.s32.totalorder %s17, 1
        %s471 = scalar_select %p470, %s17, 1
        %s472 = smul.addr %s471, 4
        %s473 = smul.addr %s472, 8
        %s474 = scalar_lea.vmem %s5, %s473
      $region52: #{scse_forward.4} parent=47 // pred_fallthru
        _
    $region48: #{scse_forward.4} parent=5 // pred_fallthru
      _
  $region6: #{scse_forward.4} parent=0 // loop_footer
    %s15 = sadd.s32 1, %s11
  $region7: #{scse_forward.4} parent=0 // loop_footer_branch
    %10 = sbr.rel target = $region3
  $region8: #{scse_forward.4} parent=0 // loop_exit
    _

// kernel: scse_forward.5
$region0: #{scse_forward.5}
  #allocation0 [shape = 'u32[]', space=smem, size = 0x4, offset = 0x4, fixed_abs, tag = 'smem constant byte address 0x4 - core index']
  #allocation1 [shape = 'u32[72,128]{1,0:T(1,128)}', space=vmem, size = 0x9000, scoped, tag = 'internal scratch']
  #allocation2 [shape = 'f32[1,1]{1,0:T(1,128)S(1)}', space=vmem, size = 0x200, scoped, tag = 'scoped memory for scse_forward.5']
  %s0 = inlined_call_operand.vmem [shape: f32[2,32,512], index: 0, kind: input, shape index: {}]
  %s1 = inlined_call_operand.vmem [shape: f32[2,32,1], index: 1, kind: input, shape index: {}]
  %s2 = inlined_call_operand.vmem [shape: f32[32,1], index: 2, kind: input, shape index: {}]
  %s3 = inlined_call_operand.<no memory space> [shape: f32[1,1], index: 3, kind: input, shape index: {}]
  %s4 = inlined_call_operand.vmem [shape: f32[2,32,512], index: 4, kind: output, shape index: {}]
  %s5 = sld [smem:[#allocation0]]
  $region49: #{scse_forward.5} parent=0
    _
  %s7 = ssub.s32 1, %s5
  %s8 = scalar_select 0, %s7, %s5
  %v9 = vstv %s3
  %10 = vst [vmem:[#allocation2] sm:$0x1] %v9
  loop: start=0, step=1, limit=4
  $region2: #{scse_forward.5} parent=0 // loop_pre_header
    _
  $region3: #{scse_forward.5} parent=0 // loop_header
    %s12 = sphi 0, %s16
    %p13 = scmp.ge.s32.totalorder %s12, 4
    %s19 = sphi 0, %s31
    %s20 = sphi 0, %s27
    %s21 = sphi 0, %s19
    %s22 = sphi 0, %s20
    %s23 = sphi 0, %s21
    %s24 = sphi 0, %s22
    %s36 = sphi 0, %s38
    %s39 = sphi 0, %s36
    %s40 = sphi 0, %s39
    %s56 = sphi 0, %s40
    %s62 = sphi 0, %s64
    %s65 = sphi 0, %s62
    %s66 = sphi 0, %s65
    %s82 = sphi 0, %s66
    %s86 = sphi 0, %s86
    %s88 = sphi 0, %s86
    %s89 = sphi 0, %s88
    %s103 = sphi 0, %s89
    %s107 = sphi 0, %s107
    %s109 = sphi 0, %s107
    %s110 = sphi 0, %s109
    %s124 = sphi 0, %s110
    %s132 = sphi 0, %s134
    %s135 = sphi 0, %s132
    %s136 = sphi 0, %s135
    %s152 = sphi 0, %s136
  $region4: #{scse_forward.5} parent=0 // loop_header_branch
    %15 = sbr.rel (%p13) target = $region8
  $region5: #{scse_forward.5} parent=0 // loop_body
    %s17 = ssub.s32 %s12, 1
    %s18 = ssub.s32 %s12, 2
    %s25 = sadd.s32 1, %s20
    %p26 = scmp.ge.s32.totalorder %s25, 1
    %s27 = scalar_select %p26, 0, %s25
    %s28 = sadd.s32 1, %s19
    %s29 = scalar_select %p26, %s28, %s19
    %p30 = scmp.ge.s32.totalorder %s29, 2
    %s31 = scalar_select %p30, 0, %s29
    %s32 = ssub.s32 %s19, %s31
    %s33 = ssub.s32 %s20, %s27
    %s34 = sor.u32 %s32, %s33
    %p35 = scmp.eq.s32.totalorder %s34, 0
    %s37 = sadd.s32 %s36, 1
    %s38 = scalar_select %p35, %s36, %s37
    %p41 = pneg %p35
    %p42 = scmp.eq.s32.totalorder %s12, 1
    %p43 = por %p41, %p42
    %p44 = scmp.ne.s32.totalorder %s36, %s39
    %p45 = scmp.eq.s32.totalorder %s12, 0
    %p46 = por %p44, %p45
    %p47 = scmp.ne.s32.totalorder %s36, %s39
    %p48 = scmp.eq.s32.totalorder %s17, 1
    %p49 = por %p47, %p48
    %p50 = scmp.ne.s32.totalorder %s39, %s40
    %p51 = scmp.eq.s32.totalorder %s17, 0
    %p52 = por %p50, %p51
    %p53 = scmp.ne.s32.totalorder %s39, %s40
    %p54 = scmp.eq.s32.totalorder %s18, 1
    %p55 = por %p53, %p54
    %p57 = scmp.ne.s32.totalorder %s40, %s56
    %p58 = scmp.eq.s32.totalorder %s18, 0
    %p59 = por %p57, %p58
    %s60 = ssub.s32 %s19, %s31
    %p61 = scmp.eq.s32.totalorder %s60, 0
    %s63 = sadd.s32 %s62, 1
    %s64 = scalar_select %p61, %s62, %s63
    %p67 = pneg %p61
    %p68 = scmp.eq.s32.totalorder %s12, 1
    %p69 = por %p67, %p68
    %p70 = scmp.ne.s32.totalorder %s62, %s65
    %p71 = scmp.eq.s32.totalorder %s12, 0
    %p72 = por %p70, %p71
    %p73 = scmp.ne.s32.totalorder %s62, %s65
    %p74 = scmp.eq.s32.totalorder %s17, 1
    %p75 = por %p73, %p74
    %p76 = scmp.ne.s32.totalorder %s65, %s66
    %p77 = scmp.eq.s32.totalorder %s17, 0
    %p78 = por %p76, %p77
    %p79 = scmp.ne.s32.totalorder %s65, %s66
    %p80 = scmp.eq.s32.totalorder %s18, 1
    %p81 = por %p79, %p80
    %p83 = scmp.ne.s32.totalorder %s66, %s82
    %p84 = scmp.eq.s32.totalorder %s18, 0
    %p85 = por %p83, %p84
    %s87 = sadd.s32 %s86, 1
    %p90 = scmp.eq.s32.totalorder %s12, 1
    %p91 = scmp.ne.s32.totalorder %s86, %s88
    %p92 = scmp.eq.s32.totalorder %s12, 0
    %p93 = por %p91, %p92
    %p94 = scmp.ne.s32.totalorder %s86, %s88
    %p95 = scmp.eq.s32.totalorder %s17, 1
    %p96 = por %p94, %p95
    %p97 = scmp.ne.s32.totalorder %s88, %s89
    %p98 = scmp.eq.s32.totalorder %s17, 0
    %p99 = por %p97, %p98
    %p100 = scmp.ne.s32.totalorder %s88, %s89
    %p101 = scmp.eq.s32.totalorder %s18, 1
    %p102 = por %p100, %p101
    %p104 = scmp.ne.s32.totalorder %s89, %s103
    %p105 = scmp.eq.s32.totalorder %s18, 0
    %p106 = por %p104, %p105
    %s108 = sadd.s32 %s107, 1
    %p111 = scmp.eq.s32.totalorder %s12, 1
    %p112 = scmp.ne.s32.totalorder %s107, %s109
    %p113 = scmp.eq.s32.totalorder %s12, 0
    %p114 = por %p112, %p113
    %p115 = scmp.ne.s32.totalorder %s107, %s109
    %p116 = scmp.eq.s32.totalorder %s17, 1
    %p117 = por %p115, %p116
    %p118 = scmp.ne.s32.totalorder %s109, %s110
    %p119 = scmp.eq.s32.totalorder %s17, 0
    %p120 = por %p118, %p119
    %p121 = scmp.ne.s32.totalorder %s109, %s110
    %p122 = scmp.eq.s32.totalorder %s18, 1
    %p123 = por %p121, %p122
    %p125 = scmp.ne.s32.totalorder %s110, %s124
    %p126 = scmp.eq.s32.totalorder %s18, 0
    %p127 = por %p125, %p126
    %s128 = ssub.s32 %s19, %s31
    %s129 = ssub.s32 %s20, %s27
    %s130 = sor.u32 %s128, %s129
    %p131 = scmp.eq.s32.totalorder %s130, 0
    %s133 = sadd.s32 %s132, 1
    %s134 = scalar_select %p131, %s132, %s133
    %p137 = pneg %p131
    %p138 = scmp.eq.s32.totalorder %s12, 1
    %p139 = por %p137, %p138
    %p140 = scmp.ne.s32.totalorder %s132, %s135
    %p141 = scmp.eq.s32.totalorder %s12, 0
    %p142 = por %p140, %p141
    %p143 = scmp.ne.s32.totalorder %s132, %s135
    %p144 = scmp.eq.s32.totalorder %s17, 1
    %p145 = por %p143, %p144
    %p146 = scmp.ne.s32.totalorder %s135, %s136
    %p147 = scmp.eq.s32.totalorder %s17, 0
    %p148 = por %p146, %p147
    %p149 = scmp.ne.s32.totalorder %s135, %s136
    %p150 = scmp.eq.s32.totalorder %s18, 1
    %p151 = por %p149, %p150
    %p153 = scmp.ne.s32.totalorder %s136, %s152
    %p154 = scmp.eq.s32.totalorder %s18, 0
    %p155 = por %p153, %p154
    %p156 = scmp.le.s32.totalorder 1, %s12
    %p157 = scmp.lt.s32.totalorder %s12, 3
    %p158 = pnand %p156, %p157
    %p159 = pneg %p158
    // Predicated region
    $region9: #{scse_forward.5} parent=5 // pred_check
      _
    $region10: #{scse_forward.5} parent=5 // pred_check_branch
      %161 = sbr.rel (%p158) target = $region12
    $region11: #{scse_forward.5} parent=5 // pred_region
      %s162 = ssub.s32 %s12, 1
      // Predicated region
      $region13: #{scse_forward.5} parent=11 // pred_check
        %p163 = pneg %p99
      $region14: #{scse_forward.5} parent=11 // pred_check_branch
        %165 = sbr.rel (%p163) target = $region16
      $region15: #{scse_forward.5} parent=11 // pred_region
        _
      $region16: #{scse_forward.5} parent=11 // pred_fallthru
        _
      // Predicated region
      $region17: #{scse_forward.5} parent=11 // pred_check
        %p166 = pneg %p120
      $region18: #{scse_forward.5} parent=11 // pred_check_branch
        %168 = sbr.rel (%p166) target = $region20
      $region19: #{scse_forward.5} parent=11 // pred_region
        _
      $region20: #{scse_forward.5} parent=11 // pred_fallthru
        _
    $region12: #{scse_forward.5} parent=5 // pred_fallthru
      _
    %p169 = scmp.lt.s32.totalorder %s12, 2
    // Predicated region
    $region21: #{scse_forward.5} parent=5 // pred_check
      %p170 = pneg %p169
    $region22: #{scse_forward.5} parent=5 // pred_check_branch
      %172 = sbr.rel (%p170) target = $region24
    $region23: #{scse_forward.5} parent=5 // pred_region
      // Predicated region
      $region25: #{scse_forward.5} parent=23 // pred_check
        %p173 = pneg %p46
      $region26: #{scse_forward.5} parent=23 // pred_check_branch
        %175 = sbr.rel (%p173) target = $region28
      $region27: #{scse_forward.5} parent=23 // pred_region
        %s176 = smul.u32 4, %s20
        %p177 = scmp.lt.s32.totalorder %s19, 1
        %s178 = scalar_select %p177, %s19, 1
        %p179 = scmp.lt.s32.totalorder %s176, 3
        %s180 = scalar_select %p179, %s176, 3
        %s181 = smul.addr %s178, 16
        %s182 = sadd.s32 %s180, %s181
        %s183 = smul.addr %s182, 8
        %s184 = scalar_lea.vmem %s0, %s183
        %s185 = smul.u32 4, %s20
      $region28: #{scse_forward.5} parent=23 // pred_fallthru
        _
      // Predicated region
      $region29: #{scse_forward.5} parent=23 // pred_check
        %p186 = pneg %p72
      $region30: #{scse_forward.5} parent=23 // pred_check_branch
        %188 = sbr.rel (%p186) target = $region32
      $region31: #{scse_forward.5} parent=23 // pred_region
        %p189 = scmp.lt.s32.totalorder %s19, 1
        %s190 = scalar_select %p189, %s19, 1
        %s191 = smul.addr %s190, 4
        %s192 = smul.addr %s191, 8
        %s193 = scalar_lea.vmem %s1, %s192
      $region32: #{scse_forward.5} parent=23 // pred_fallthru
        _
    $region24: #{scse_forward.5} parent=5 // pred_fallthru
      _
    %p194 = scmp.le.s32.totalorder 1, %s12
    %p195 = scmp.lt.s32.totalorder %s12, 3
    %p196 = pnand %p194, %p195
    %p197 = pneg %p196
    // Predicated region
    $region33: #{scse_forward.5} parent=5 // pred_check
      _
    $region34: #{scse_forward.5} parent=5 // pred_check_branch
      %199 = sbr.rel (%p196) target = $region36
    $region35: #{scse_forward.5} parent=5 // pred_region
      %s200 = ssub.s32 %s12, 1
      %s201 = smul.u32 4, %s22
      %p202 = scmp.lt.s32.totalorder %s21, 1
      %s203 = scalar_select %p202, %s21, 1
      %p204 = scmp.lt.s32.totalorder %s201, 3
      %s205 = scalar_select %p204, %s201, 3
      %s206 = smul.addr %s203, 16
      %s207 = sadd.s32 %s205, %s206
      %s208 = smul.addr %s207, 8
      %s209 = scalar_lea.vmem %s0, %s208
      %p210 = pneg %p52
      %p211 = pneg %p49
      %p212 = scmp.lt.s32.totalorder %s21, 1
      %s213 = scalar_select %p212, %s21, 1
      %s214 = smul.addr %s213, 4
      %s215 = smul.addr %s214, 8
      %s216 = scalar_lea.vmem %s1, %s215
      %p217 = pneg %p78
      %p218 = pneg %p75
      %p219 = pneg %p99
      %p220 = pneg %p96
      %p221 = pneg %p120
      %p222 = pneg %p117
      %p223 = pneg %p148
      %p224 = pneg %p145
      %s225 = smul.u32 4, %s22
      %p226 = scmp.lt.s32.totalorder %s21, 1
      %s227 = scalar_select %p226, %s21, 1
      %p228 = scmp.lt.s32.totalorder %s225, 3
      %s229 = scalar_select %p228, %s225, 3
      %s230 = smul.addr %s227, 16
      %s231 = sadd.s32 %s229, %s230
      %s232 = smul.addr %s231, 8
      %s233 = scalar_lea.vmem %s4, %s232
      %s234 = smul.u32 4, %s22
      %p235 = scmp.lt.s32.totalorder %s21, 1
      %s236 = scalar_select %p235, %s21, 1
      %p237 = scmp.lt.s32.totalorder %s234, 3
      %s238 = scalar_select %p237, %s234, 3
      %s239 = smul.addr %s236, 16
      %s240 = sadd.s32 %s238, %s239
      %s241 = smul.addr %s240, 8
      %s242 = scalar_lea.vmem %s0, %s241
      %s243 = smul.u32 4, %s22
      %p244 = scmp.lt.s32.totalorder %s21, 1
      %s245 = scalar_select %p244, %s21, 1
      %s246 = smul.addr %s245, 4
      %s247 = smul.addr %s246, 8
      %s248 = scalar_lea.vmem %s1, %s247
      %s249 = smul.u32 4, %s22
      %p250 = scmp.lt.s32.totalorder %s21, 1
      %s251 = scalar_select %p250, %s21, 1
      %p252 = scmp.lt.s32.totalorder %s249, 3
      %s253 = scalar_select %p252, %s249, 3
      %s254 = smul.addr %s251, 16
      %s255 = sadd.s32 %s253, %s254
      %s256 = smul.addr %s255, 8
      %s257 = scalar_lea.vmem %s4, %s256
      %s258 = smul.u32 4, %s22
      %v259 = vld [vmem:[%s242] sm:$0xff]
      %v260 = vld [vmem:[%s242 + $0x8] sm:$0xff]
      %v261 = vld [vmem:[%s242 + $0x10] sm:$0xff]
      %v262 = vld [vmem:[%s242 + $0x18] sm:$0xff]
      %v263 = vld [vmem:[%s242 + $0x20] sm:$0xff]
      %v264 = vld [vmem:[%s242 + $0x28] sm:$0xff]
      %v265 = vld [vmem:[%s242 + $0x30] sm:$0xff]
      %v266 = vld [vmem:[%s242 + $0x38] sm:$0xff]
      %v267 = vld [vmem:[%s242 + $0x40] sm:$0xff]
      %v268 = vld [vmem:[%s242 + $0x48] sm:$0xff]
      %v269 = vld [vmem:[%s242 + $0x50] sm:$0xff]
      %v270 = vld [vmem:[%s242 + $0x58] sm:$0xff]
      %v271 = vld [vmem:[%s242 + $0x60] sm:$0xff]
      %v272 = vld [vmem:[%s242 + $0x68] sm:$0xff]
      %v273 = vld [vmem:[%s242 + $0x70] sm:$0xff]
      %v274 = vld [vmem:[%s242 + $0x78] sm:$0xff]
      %v275 = vld [vmem:[%s2] sm:$0xff]
      %v276 = vld [vmem:[%s2 + $0x8] sm:$0xff]
      %v277 = vld [vmem:[%s2 + $0x10] sm:$0xff]
      %v278 = vld [vmem:[%s2 + $0x18] sm:$0xff]
      %280 = vset.pattern.permute.xlu0 0
      %281 = vperm.xlu0 %280, %v275
      %v282 = vpop.permute.xlu0 %281
      %285 = vset.pattern.permute.xlu0 0
      %286 = vperm.xlu0 %285, %v276
      %v287 = vpop.permute.xlu0 %286
      %290 = vset.pattern.permute.xlu0 0
      %291 = vperm.xlu0 %290, %v277
      %v292 = vpop.permute.xlu0 %291
      %295 = vset.pattern.permute.xlu0 0
      %296 = vperm.xlu0 %295, %v278
      %v297 = vpop.permute.xlu0 %296
      %v299 = vmul.f32 %v259, %v282
      %v300 = vmul.f32 %v260, %v282
      %v301 = vmul.f32 %v261, %v282
      %v302 = vmul.f32 %v262, %v282
      %v303 = vmul.f32 %v263, %v287
      %v304 = vmul.f32 %v264, %v287
      %v305 = vmul.f32 %v265, %v287
      %v306 = vmul.f32 %v266, %v287
      %v307 = vmul.f32 %v267, %v292
      %v308 = vmul.f32 %v268, %v292
      %v309 = vmul.f32 %v269, %v292
      %v310 = vmul.f32 %v270, %v292
      %v311 = vmul.f32 %v271, %v297
      %v312 = vmul.f32 %v272, %v297
      %v313 = vmul.f32 %v273, %v297
      %v314 = vmul.f32 %v274, %v297
      %v315 = vadd.f32 %v299, %v303
      %v316 = vadd.f32 %v315, %v307
      %v317 = vadd.f32 %v316, %v311
      %v318 = vrot.slane %v317, 4
      %v319 = vadd.f32 %v317, %v318
      %v320 = vrot.slane %v319, 2
      %v321 = vadd.f32 %v319, %v320
      %v322 = vrot.slane %v321, 1
      %v323 = vadd.f32 %v321, %v322
      %v324 = vadd.f32 %v300, %v304
      %v325 = vadd.f32 %v324, %v308
      %v326 = vadd.f32 %v325, %v312
      %v327 = vrot.slane %v326, 4
      %v328 = vadd.f32 %v326, %v327
      %v329 = vrot.slane %v328, 2
      %v330 = vadd.f32 %v328, %v329
      %v331 = vrot.slane %v330, 1
      %v332 = vadd.f32 %v330, %v331
      %v333 = vadd.f32 %v301, %v305
      %v334 = vadd.f32 %v333, %v309
      %v335 = vadd.f32 %v334, %v313
      %v336 = vrot.slane %v335, 4
      %v337 = vadd.f32 %v335, %v336
      %v338 = vrot.slane %v337, 2
      %v339 = vadd.f32 %v337, %v338
      %v340 = vrot.slane %v339, 1
      %v341 = vadd.f32 %v339, %v340
      %v342 = vadd.f32 %v302, %v306
      %v343 = vadd.f32 %v342, %v310
      %v344 = vadd.f32 %v343, %v314
      %v345 = vrot.slane %v344, 4
      %v346 = vadd.f32 %v344, %v345
      %v347 = vrot.slane %v346, 2
      %v348 = vadd.f32 %v346, %v347
      %v349 = vrot.slane %v348, 1
      %v350 = vadd.f32 %v348, %v349
      %v351 = vld [vmem:[#allocation2] sm:$0x1]
      %s352 = vtos %v351
      %v353 = vstv %s352
      %v354 = vadd.f32 %v323, %v353
      %v355 = vadd.f32 %v332, %v353
      %v356 = vadd.f32 %v341, %v353
      %v357 = vadd.f32 %v350, %v353
      %v358 = vld [vmem:[%s248] sm:$0xff]
      %v359 = vld [vmem:[%s248 + $0x8] sm:$0xff]
      %v360 = vld [vmem:[%s248 + $0x10] sm:$0xff]
      %v361 = vld [vmem:[%s248 + $0x18] sm:$0xff]
      %v362 = vxor.u32 %v354, 2147483648
      %v363 = vxor.u32 %v355, 2147483648
      %v364 = vxor.u32 %v356, 2147483648
      %v365 = vxor.u32 %v357, 2147483648
      %v366 = vmul.f32 %v362, 1.442695
      %v367 = vpow.pop %v366
      %v368 = vmul.f32 %v363, 1.442695
      %v369 = vpow.pop %v368
      %v370 = vmul.f32 %v364, 1.442695
      %v371 = vpow.pop %v370
      %v372 = vmul.f32 %v365, 1.442695
      %v373 = vpow.pop %v372
      %v374 = vadd.f32 %v367, 1.0
      %v375 = vadd.f32 %v369, 1.0
      %v376 = vadd.f32 %v371, 1.0
      %v377 = vadd.f32 %v373, 1.0
      %v378 = vrcp.pop %v374
      %v379 = vmul.f32 %v374, %v378
      %v380 = vsub.f32 1.0, %v379
      %v381 = vmul.f32 %v378, %v380
      %v382 = vadd.f32 %v378, %v381
      %vm383 = vweird.f32 %v374
      %vm384 = vweird.f32 %v378
      %vm385 = vmor %vm383, %vm384
      %v386 = vsel %vm385, %v378, %v382
      %v387 = vand.u32 2147483647, %v374
      %vm388 = vcmp.eq.f32.partialorder %v387, 8.507059e+37
      %v389 = vand.u32 %v374, 2147483648
      %v390 = vor.u32 1.1754944e-38, %v389
      %v391 = vsel %vm388, %v390, %v386
      %v392 = vmul.f32 1.0, %v391
      %v393 = vrcp.pop %v375
      %v394 = vmul.f32 %v375, %v393
      %v395 = vsub.f32 1.0, %v394
      %v396 = vmul.f32 %v393, %v395
      %v397 = vadd.f32 %v393, %v396
      %vm398 = vweird.f32 %v375
      %vm399 = vweird.f32 %v393
      %vm400 = vmor %vm398, %vm399
      %v401 = vsel %vm400, %v393, %v397
      %v402 = vand.u32 2147483647, %v375
      %vm403 = vcmp.eq.f32.partialorder %v402, 8.507059e+37
      %v404 = vand.u32 %v375, 2147483648
      %v405 = vor.u32 1.1754944e-38, %v404
      %v406 = vsel %vm403, %v405, %v401
      %v407 = vmul.f32 1.0, %v406
      %v408 = vrcp.pop %v376
      %v409 = vmul.f32 %v376, %v408
      %v410 = vsub.f32 1.0, %v409
      %v411 = vmul.f32 %v408, %v410
      %v412 = vadd.f32 %v408, %v411
      %vm413 = vweird.f32 %v376
      %vm414 = vweird.f32 %v408
      %vm415 = vmor %vm413, %vm414
      %v416 = vsel %vm415, %v408, %v412
      %v417 = vand.u32 2147483647, %v376
      %vm418 = vcmp.eq.f32.partialorder %v417, 8.507059e+37
      %v419 = vand.u32 %v376, 2147483648
      %v420 = vor.u32 1.1754944e-38, %v419
      %v421 = vsel %vm418, %v420, %v416
      %v422 = vmul.f32 1.0, %v421
      %v423 = vrcp.pop %v377
      %v424 = vmul.f32 %v377, %v423
      %v425 = vsub.f32 1.0, %v424
      %v426 = vmul.f32 %v423, %v425
      %v427 = vadd.f32 %v423, %v426
      %vm428 = vweird.f32 %v377
      %vm429 = vweird.f32 %v423
      %vm430 = vmor %vm428, %vm429
      %v431 = vsel %vm430, %v423, %v427
      %v432 = vand.u32 2147483647, %v377
      %vm433 = vcmp.eq.f32.partialorder %v432, 8.507059e+37
      %v434 = vand.u32 %v377, 2147483648
      %v435 = vor.u32 1.1754944e-38, %v434
      %v436 = vsel %vm433, %v435, %v431
      %v437 = vmul.f32 1.0, %v436
      %439 = vset.pattern.permute.xlu0 0
      %440 = vperm.xlu0 %439, %v358
      %v441 = vpop.permute.xlu0 %440
      %444 = vset.pattern.permute.xlu0 0
      %445 = vperm.xlu0 %444, %v359
      %v446 = vpop.permute.xlu0 %445
      %449 = vset.pattern.permute.xlu0 0
      %450 = vperm.xlu0 %449, %v360
      %v451 = vpop.permute.xlu0 %450
      %454 = vset.pattern.permute.xlu0 0
      %455 = vperm.xlu0 %454, %v361
      %v456 = vpop.permute.xlu0 %455
      %v458 = vadd.f32 %v441, %v392
      %v459 = vadd.f32 %v441, %v407
      %v460 = vadd.f32 %v441, %v422
      %v461 = vadd.f32 %v441, %v437
      %v462 = vadd.f32 %v446, %v392
      %v463 = vadd.f32 %v446, %v407
      %v464 = vadd.f32 %v446, %v422
      %v465 = vadd.f32 %v446, %v437
      %v466 = vadd.f32 %v451, %v392
      %v467 = vadd.f32 %v451, %v407
      %v468 = vadd.f32 %v451, %v422
      %v469 = vadd.f32 %v451, %v437
      %v470 = vadd.f32 %v456, %v392
      %v471 = vadd.f32 %v456, %v407
      %v472 = vadd.f32 %v456, %v422
      %v473 = vadd.f32 %v456, %v437
      %v474 = vmul.f32 %v259, %v458
      %v475 = vmul.f32 %v260, %v459
      %v476 = vmul.f32 %v261, %v460
      %v477 = vmul.f32 %v262, %v461
      %v478 = vmul.f32 %v263, %v462
      %v479 = vmul.f32 %v264, %v463
      %v480 = vmul.f32 %v265, %v464
      %v481 = vmul.f32 %v266, %v465
      %v482 = vmul.f32 %v267, %v466
      %v483 = vmul.f32 %v268, %v467
      %v484 = vmul.f32 %v269, %v468
      %v485 = vmul.f32 %v270, %v469
      %v486 = vmul.f32 %v271, %v470
      %v487 = vmul.f32 %v272, %v471
      %v488 = vmul.f32 %v273, %v472
      %v489 = vmul.f32 %v274, %v473
      %490 = vst [vmem:[%s257] sm:$0xff] %v474
      %491 = vst [vmem:[%s257 + $0x8] sm:$0xff] %v475
      %492 = vst [vmem:[%s257 + $0x10] sm:$0xff] %v476
      %493 = vst [vmem:[%s257 + $0x18] sm:$0xff] %v477
      %494 = vst [vmem:[%s257 + $0x20] sm:$0xff] %v478
      %495 = vst [vmem:[%s257 + $0x28] sm:$0xff] %v479
      %496 = vst [vmem:[%s257 + $0x30] sm:$0xff] %v480
      %497 = vst [vmem:[%s257 + $0x38] sm:$0xff] %v481
      %498 = vst [vmem:[%s257 + $0x40] sm:$0xff] %v482
      %499 = vst [vmem:[%s257 + $0x48] sm:$0xff] %v483
      %500 = vst [vmem:[%s257 + $0x50] sm:$0xff] %v484
      %501 = vst [vmem:[%s257 + $0x58] sm:$0xff] %v485
      %502 = vst [vmem:[%s257 + $0x60] sm:$0xff] %v486
      %503 = vst [vmem:[%s257 + $0x68] sm:$0xff] %v487
      %504 = vst [vmem:[%s257 + $0x70] sm:$0xff] %v488
      %505 = vst [vmem:[%s257 + $0x78] sm:$0xff] %v489
      %s506 = smul.u32 4, %s22
      %p507 = scmp.lt.s32.totalorder %s21, 1
      %s508 = scalar_select %p507, %s21, 1
      %p509 = scmp.lt.s32.totalorder %s506, 3
      %s510 = scalar_select %p509, %s506, 3
      %s511 = smul.addr %s508, 16
      %s512 = sadd.s32 %s510, %s511
      %s513 = smul.addr %s512, 8
      %s514 = scalar_lea.vmem %s4, %s513
      // Predicated region
      $region37: #{scse_forward.5} parent=35 // pred_check
        %p515 = pneg %p145
      $region38: #{scse_forward.5} parent=35 // pred_check_branch
        %517 = sbr.rel (%p515) target = $region40
      $region39: #{scse_forward.5} parent=35 // pred_region
        %s518 = smul.u32 4, %s22
      $region40: #{scse_forward.5} parent=35 // pred_fallthru
        _
    $region36: #{scse_forward.5} parent=5 // pred_fallthru
      _
    %p519 = scmp.le.s32.totalorder 2, %s12
    // Predicated region
    $region41: #{scse_forward.5} parent=5 // pred_check
      %p520 = pneg %p519
    $region42: #{scse_forward.5} parent=5 // pred_check_branch
      %522 = sbr.rel (%p520) target = $region44
    $region43: #{scse_forward.5} parent=5 // pred_region
      %s523 = ssub.s32 %s12, 2
      // Predicated region
      $region45: #{scse_forward.5} parent=43 // pred_check
        %p524 = pneg %p151
      $region46: #{scse_forward.5} parent=43 // pred_check_branch
        %526 = sbr.rel (%p524) target = $region48
      $region47: #{scse_forward.5} parent=43 // pred_region
        %s527 = smul.u32 4, %s24
        %p528 = scmp.lt.s32.totalorder %s23, 1
        %s529 = scalar_select %p528, %s23, 1
        %p530 = scmp.lt.s32.totalorder %s527, 3
        %s531 = scalar_select %p530, %s527, 3
        %s532 = smul.addr %s529, 16
        %s533 = sadd.s32 %s531, %s532
        %s534 = smul.addr %s533, 8
        %s535 = scalar_lea.vmem %s4, %s534
      $region48: #{scse_forward.5} parent=43 // pred_fallthru
        _
    $region44: #{scse_forward.5} parent=5 // pred_fallthru
      _
  $region6: #{scse_forward.5} parent=0 // loop_footer
    %s16 = sadd.s32 1, %s12
  $region7: #{scse_forward.5} parent=0 // loop_footer_branch
    %11 = sbr.rel target = $region3
  $region8: #{scse_forward.5} parent=0 // loop_exit
    _

</llo_original>
